<compile_context>
chip_gen: v7x
topology: tpu7x:2x2x1
jax: 0.10.0
libtpu: 0.0.40
codegen_flags: <defaults>
</compile_context>

<pallas_src>
import math

import jax
import jax.numpy as jnp
import numpy as np
from jax import lax
from jax.experimental import pallas as pl
from jax.experimental.pallas import tpu as pltpu


def _make_mha_kernel(n_heads: int, head_dim: int, use_mask: bool):
    H, D = n_heads, head_dim
    scale = 1.0 / math.sqrt(head_dim)

    def kernel(*refs):
        if use_mask:
            (bias_ref, q_ref, k_ref, v_ref,
             wq_ref, bq_ref, wk_ref, bk_ref, wv_ref, bv_ref,
             wp_ref, bp_ref, o_ref,
             qs_ref, m_ref, l_ref, acc_ref) = refs
        else:
            (q_ref, k_ref, v_ref,
             wq_ref, bq_ref, wk_ref, bk_ref, wv_ref, bv_ref,
             wp_ref, bp_ref, o_ref,
             qs_ref, m_ref, l_ref, acc_ref) = refs
            bias_ref = None

        ki = pl.program_id(2)
        nk = pl.num_programs(2)

        # ---- Phase 0 (first K tile of this (b, q-tile)): project Q once, fold the
        # 1/sqrt(D) scale into it, and init the online-softmax accumulators. -------
        @pl.when(ki == 0)
        def _init():
            q_in = q_ref[0].astype(jnp.bfloat16)                       # (tq, C)
            qp = jnp.dot(q_in, wq_ref[...],
                         preferred_element_type=jnp.float32) + bq_ref[...]
            qs_ref[...] = qp * scale
            m_ref[...] = jnp.full_like(m_ref, -jnp.inf)
            l_ref[...] = jnp.zeros_like(l_ref)
            acc_ref[...] = jnp.zeros_like(acc_ref)

        # ---- Project this K/V tile (bf16 MXU operands, f32 accumulation). --------
        k_in = k_ref[0].astype(jnp.bfloat16)                           # (tk, C)
        v_in = v_ref[0].astype(jnp.bfloat16)
        kp = (jnp.dot(k_in, wk_ref[...], preferred_element_type=jnp.float32)
              + bk_ref[...]).astype(jnp.bfloat16)
        vp = (jnp.dot(v_in, wv_ref[...], preferred_element_type=jnp.float32)
              + bv_ref[...]).astype(jnp.bfloat16)

        if bias_ref is not None:
            bias = bias_ref[0, 0]                                      # (tq, tk) f32 additive

        # ---- Per-head attention using lane-column slices (no head transposes). ---
        for h in range(H):
            lo, hi = h * D, (h + 1) * D
            qh = qs_ref[:, lo:hi].astype(jnp.bfloat16)                 # (tq, D)
            kh = kp[:, lo:hi]                                          # (tk, D)
            vh = vp[:, lo:hi]                                          # (tk, D)

            # scores = qh @ kh^T  (scale already folded into q)
            s = lax.dot_general(qh, kh, (((1,), (1,)), ((), ())),
                                preferred_element_type=jnp.float32)    # (tq, tk)
            if bias_ref is not None:
                s = s + bias                                           # f32 masking

            m_prev = m_ref[:, h:h + 1]
            m_new = jnp.maximum(m_prev, jnp.max(s, axis=-1, keepdims=True))
            alpha = jnp.exp(m_prev - m_new)                            # f32 rescale
            p = jnp.exp(s - m_new)                                     # f32 numerator
            l_ref[:, h:h + 1] = alpha * l_ref[:, h:h + 1] + jnp.sum(
                p, axis=-1, keepdims=True)
            acc_ref[:, lo:hi] = alpha * acc_ref[:, lo:hi] + jnp.dot(
                p.astype(jnp.bfloat16), vh, preferred_element_type=jnp.float32)
            m_ref[:, h:h + 1] = m_new

        # ---- Phase 2 (last K tile): deferred normalization + output projection. --
        @pl.when(ki == nk - 1)
        def _finalize():
            for h in range(H):
                lo, hi = h * D, (h + 1) * D
                inv_l = pl.reciprocal(l_ref[:, h:h + 1], approx=True)  # EUP slot
                acc_ref[:, lo:hi] = acc_ref[:, lo:hi] * inv_l
            ctx = acc_ref[...].astype(jnp.bfloat16)                    # heads already merged
            out = jnp.dot(ctx, wp_ref[...],
                          preferred_element_type=jnp.float32) + bp_ref[...]
            o_ref[0] = out.astype(o_ref.dtype)

    return kernel


def mha_forward(q, k, v, params, n_heads, mask=None, *, q_tile=256, k_tile=512):
    """q: (B, Lq, C), k/v: (B, Lk, C), mask: optional (B, 1, Lq, Lk) with 0 == masked."""
    B, Lq, C = q.shape
    _, Lk, _ = k.shape
    assert C % n_heads == 0, "embed_dim is not divisible by n_heads"
    D = C // n_heads

    tq = min(q_tile, Lq)
    tk = min(k_tile, Lk)
    assert Lq % tq == 0 and Lk % tk == 0, "Lq/Lk must divide evenly into the chosen tiles"
    nq, nk = Lq // tq, Lk // tk

    wq, bq, wk, bk, wv, bv, wp, bp = params
    # bf16 weights for the MXU (f32 accumulation happens in-kernel); biases stay f32.
    bf = jnp.bfloat16
    wq_b, wk_b, wv_b, wp_b = (w.astype(bf) for w in (wq, wk, wv, wp))

    use_mask = mask is not None
    kernel = _make_mha_kernel(n_heads, D, use_mask)

    q_spec = pl.BlockSpec((1, tq, C), lambda b, qi, ki: (b, qi, 0))
    kv_spec = pl.BlockSpec((1, tk, C), lambda b, qi, ki: (b, ki, 0))
    w_spec = pl.BlockSpec((C, C), lambda b, qi, ki: (0, 0))
    bvec_spec = pl.BlockSpec((1, C), lambda b, qi, ki: (0, 0))

    in_specs, inputs = [], []
    if use_mask:
        # Additive f32 bias: removes the per-head compare+select over the scores.
        bias = jnp.where(mask == 0, jnp.float32(-1e10), jnp.float32(0.0))
        in_specs.append(pl.BlockSpec((1, 1, tq, tk), lambda b, qi, ki: (b, 0, qi, ki)))
        inputs.append(bias)
    in_specs += [q_spec, kv_spec, kv_spec,
                 w_spec, bvec_spec, w_spec, bvec_spec, w_spec, bvec_spec,
                 w_spec, bvec_spec]
    inputs += [q, k, v, wq_b, bq, wk_b, bk, wv_b, bv, wp_b, bp]

    flops = (2 * B * Lq * C * C                    # Q projection
             + 2 * B * nq * 2 * Lk * C * C         # K/V projection (per Q tile)
             + 4 * B * n_heads * Lq * Lk * D       # QK^T + attn @ V
             + 2 * B * Lq * C * C)                 # output projection
    transcendentals = B * n_heads * Lq * (Lk + nk)  # exp(p) + exp(alpha)
    bytes_accessed = (sum(int(x.size) * x.dtype.itemsize for x in inputs)
                      + B * Lq * C * q.dtype.itemsize)

    return pl.pallas_call(
        kernel,
        out_shape=jax.ShapeDtypeStruct((B, Lq, C), q.dtype),
        grid_spec=pltpu.PrefetchScalarGridSpec(
            num_scalar_prefetch=0,
            grid=(B, nq, nk),
            in_specs=in_specs,
            out_specs=pl.BlockSpec((1, tq, C), lambda b, qi, ki: (b, qi, 0)),
            scratch_shapes=[
                pltpu.VMEM((tq, C), jnp.float32),         # scaled Q projection
                pltpu.VMEM((tq, n_heads), jnp.float32),   # running max m (per head)
                pltpu.VMEM((tq, n_heads), jnp.float32),   # running sum l (per head)
                pltpu.VMEM((tq, C), jnp.float32),         # context accumulator (heads merged)
            ]),
        compiler_params=pltpu.CompilerParams(
            dimension_semantics=("parallel", "parallel", "arbitrary"),
            vmem_limit_bytes=48 * 1024 * 1024),
        cost_estimate=pl.CostEstimate(flops=flops,
                                      transcendentals=transcendentals,
                                      bytes_accessed=bytes_accessed),
    )(*inputs)


def mha_reference(q, k, v, params, n_heads, mask=None):
    """Pure-JAX reference mirroring the PyTorch forward (eval mode) with the kernel's
    numerics: bf16 MXU operands, f32 accumulation, f32 softmax."""
    wq, bq, wk, bk, wv, bv, wp, bp = params
    B, Lq, C = q.shape
    _, Lk, _ = k.shape
    H = n_heads
    D = C // H
    bf = jnp.bfloat16

    def proj(x, w, b):
        return jnp.einsum('blc,cd->bld', x.astype(bf), w.astype(bf),
                          preferred_element_type=jnp.float32) + b

    def split(x, L):
        return x.reshape(B, L, H, D).transpose(0, 2, 1, 3)

    qh = split(proj(q, wq, bq), Lq) / math.sqrt(D)
    kh = split(proj(k, wk, bk), Lk)
    vh = split(proj(v, wv, bv), Lk)

    s = jnp.einsum('bhld,bhmd->bhlm', qh.astype(bf), kh.astype(bf),
                   preferred_element_type=jnp.float32)
    if mask is not None:
        s = jnp.where(mask == 0, -1e10, s)
    attn = jax.nn.softmax(s, axis=-1)
    x = jnp.einsum('bhlm,bhmd->bhld', attn.astype(bf), vh.astype(bf),
                   preferred_element_type=jnp.float32)
    x = x.transpose(0, 2, 1, 3).reshape(B, Lq, C)
    return jnp.einsum('blc,cd->bld', x.astype(bf), wp.astype(bf),
                      preferred_element_type=jnp.float32) + bp


def init_params(key, embed_dim):
    ks = jax.random.split(key, 8)
    bound = 1.0 / math.sqrt(embed_dim)

    def lin(kw, kb):
        w = jax.random.uniform(kw, (embed_dim, embed_dim), jnp.float32, -bound, bound)
        b = jax.random.uniform(kb, (1, embed_dim), jnp.float32, -bound, bound)
        return w, b

    wq, bq = lin(ks[0], ks[1])
    wk, bk = lin(ks[2], ks[3])
    wv, bv = lin(ks[4], ks[5])
    wp, bp = lin(ks[6], ks[7])
    return (wq, bq, wk, bk, wv, bv, wp, bp)


if __name__ == "__main__":
    B, L, C, H = 2, 8, 32, 4

    key = jax.random.PRNGKey(0)
    k_param, k_q, k_k, k_v = jax.random.split(key, 4)

    params = init_params(k_param, C)
    q = jax.random.normal(k_q, (B, L, C), jnp.float32)
    k = jax.random.normal(k_k, (B, L, C), jnp.float32)
    v = jax.random.normal(k_v, (B, L, C), jnp.float32)

    # Causal mask in the PyTorch-forward convention: 0 == masked out.
    causal = jnp.tril(jnp.ones((L, L), jnp.int32))[None, None, :, :]
    mask = jnp.broadcast_to(causal, (B, 1, L, L))

    # No-mask path
    out = mha_forward(q, k, v, params, H, mask=None)
    jax.block_until_ready(out)
    ref = mha_reference(q, k, v, params, H, mask=None)
    np.testing.assert_allclose(np.asarray(out), np.asarray(ref), rtol=2e-2, atol=2e-2)

    # Masked path
    out_m = mha_forward(q, k, v, params, H, mask=mask)
    jax.block_until_ready(out_m)
    ref_m = mha_reference(q, k, v, params, H, mask=mask)
    np.testing.assert_allclose(np.asarray(out_m), np.asarray(ref_m), rtol=2e-2, atol=2e-2)

    print("KERNEL_OK")
</pallas_src>

<mosaic_0001>
module attributes {stable_mosaic.version = 11 : i64} {
  func.func @kernel(%arg0: i32, %arg1: i32, %arg2: i32, %arg3: memref<1x8x32xf32, #tpu.memory_space<vmem>>, %arg4: memref<1x8x32xf32, #tpu.memory_space<vmem>>, %arg5: memref<1x8x32xf32, #tpu.memory_space<vmem>>, %arg6: memref<32x32xbf16, #tpu.memory_space<vmem>>, %arg7: memref<1x32xf32, #tpu.memory_space<vmem>>, %arg8: memref<32x32xbf16, #tpu.memory_space<vmem>>, %arg9: memref<1x32xf32, #tpu.memory_space<vmem>>, %arg10: memref<32x32xbf16, #tpu.memory_space<vmem>>, %arg11: memref<1x32xf32, #tpu.memory_space<vmem>>, %arg12: memref<32x32xbf16, #tpu.memory_space<vmem>>, %arg13: memref<1x32xf32, #tpu.memory_space<vmem>>, %arg14: memref<1x8x32xf32, #tpu.memory_space<vmem>>, %arg15: memref<8x32xf32, #tpu.memory_space<vmem>>, %arg16: memref<8x4xf32, #tpu.memory_space<vmem>>, %arg17: memref<8x4xf32, #tpu.memory_space<vmem>>, %arg18: memref<8x32xf32, #tpu.memory_space<vmem>>) attributes {dimension_semantics = [#tpu.dimension_semantics<parallel>, #tpu.dimension_semantics<parallel>, #tpu.dimension_semantics<arbitrary>], iteration_bounds = array<i64: 2, 1, 1>, scalar_prefetch = 0 : i64, scratch_operands = 4 : i64, tpu.core_type = #tpu.core_type<tc>, window_params = [{transform_indices = @transform_0, window_bounds = array<i64: 1, 8, 32>}, {transform_indices = @transform_1, window_bounds = array<i64: 1, 8, 32>}, {transform_indices = @transform_2, window_bounds = array<i64: 1, 8, 32>}, {pipeline_mode = #tpu.pipeline_mode<synchronous>, transform_indices = @transform_3, window_bounds = array<i64: 32, 32>}, {pipeline_mode = #tpu.pipeline_mode<synchronous>, transform_indices = @transform_4, window_bounds = array<i64: 1, 32>}, {pipeline_mode = #tpu.pipeline_mode<synchronous>, transform_indices = @transform_5, window_bounds = array<i64: 32, 32>}, {pipeline_mode = #tpu.pipeline_mode<synchronous>, transform_indices = @transform_6, window_bounds = array<i64: 1, 32>}, {pipeline_mode = #tpu.pipeline_mode<synchronous>, transform_indices = @transform_7, window_bounds = array<i64: 32, 32>}, {pipeline_mode = #tpu.pipeline_mode<synchronous>, transform_indices = @transform_8, window_bounds = array<i64: 1, 32>}, {pipeline_mode = #tpu.pipeline_mode<synchronous>, transform_indices = @transform_9, window_bounds = array<i64: 32, 32>}, {pipeline_mode = #tpu.pipeline_mode<synchronous>, transform_indices = @transform_10, window_bounds = array<i64: 1, 32>}, {transform_indices = @transform_11, window_bounds = array<i64: 1, 8, 32>}]} {
    %c0_i32 = arith.constant 0 : i32
    %0 = arith.cmpi eq, %arg2, %c0_i32 : i32
    %1 = arith.extui %0 : i1 to i32
    %c0_i32_0 = arith.constant 0 : i32
    %2 = arith.cmpi ne, %1, %c0_i32_0 : i32
    scf.if %2 {
      %c0_83 = arith.constant 0 : index
      %c0_84 = arith.constant 0 : index
      %c0_85 = arith.constant 0 : index
      %136 = vector.load %arg3[%c0_83, %c0_84, %c0_85] : memref<1x8x32xf32, #tpu.memory_space<vmem>>, vector<1x8x32xf32>
      %137 = vector.shape_cast %136 : vector<1x8x32xf32> to vector<8x32xf32>
      %138 = arith.truncf %137 : vector<8x32xf32> to vector<8x32xbf16>
      %c0_86 = arith.constant 0 : index
      %c0_87 = arith.constant 0 : index
      %139 = vector.load %arg6[%c0_86, %c0_87] : memref<32x32xbf16, #tpu.memory_space<vmem>>, vector<32x32xbf16>
      %cst_88 = arith.constant dense<0.000000e+00> : vector<8x32xf32>
      %140 = tpu.matmul %138, %139, %cst_88 {dimension_numbers = #tpu.dot_dimension_numbers<[1], [0], [0], [1], [0, 0, 1, 1], [], []>} : vector<8x32xbf16>, vector<32x32xbf16>, vector<8x32xf32> -> vector<8x32xf32>
      %c0_89 = arith.constant 0 : index
      %c0_90 = arith.constant 0 : index
      %141 = vector.load %arg7[%c0_89, %c0_90] : memref<1x32xf32, #tpu.memory_space<vmem>>, vector<1x32xf32>
      %142 = vector.broadcast %141 : vector<1x32xf32> to vector<8x32xf32>
      %143 = arith.addf %140, %142 : vector<8x32xf32>
      %cst_91 = arith.constant 0.353553385 : f32
      %144 = vector.broadcast %cst_91 : f32 to vector<8x32xf32>
      %145 = arith.mulf %143, %144 : vector<8x32xf32>
      %c0_92 = arith.constant 0 : index
      %c0_93 = arith.constant 0 : index
      %146 = vector.load %arg15[%c0_92, %c0_93] : memref<8x32xf32, #tpu.memory_space<vmem>>, vector<8x32xf32>
      tpu.vector_store %arg15[%c0_92, %c0_93], %145 {strides = array<i32>} : memref<8x32xf32, #tpu.memory_space<vmem>>, vector<8x32xf32>,
      %cst_94 = arith.constant 0xFF800000 : f32
      %147 = vector.broadcast %cst_94 : f32 to vector<8x4xf32>
      %c0_95 = arith.constant 0 : index
      %c0_96 = arith.constant 0 : index
      %148 = vector.load %arg16[%c0_95, %c0_96] : memref<8x4xf32, #tpu.memory_space<vmem>>, vector<8x4xf32>
      tpu.vector_store %arg16[%c0_95, %c0_96], %147 {strides = array<i32>} : memref<8x4xf32, #tpu.memory_space<vmem>>, vector<8x4xf32>,
      %cst_97 = arith.constant 0.000000e+00 : f32
      %149 = vector.broadcast %cst_97 : f32 to vector<8x4xf32>
      %c0_98 = arith.constant 0 : index
      %c0_99 = arith.constant 0 : index
      %150 = vector.load %arg17[%c0_98, %c0_99] : memref<8x4xf32, #tpu.memory_space<vmem>>, vector<8x4xf32>
      tpu.vector_store %arg17[%c0_98, %c0_99], %149 {strides = array<i32>} : memref<8x4xf32, #tpu.memory_space<vmem>>, vector<8x4xf32>,
      %cst_100 = arith.constant 0.000000e+00 : f32
      %151 = vector.broadcast %cst_100 : f32 to vector<8x32xf32>
      %c0_101 = arith.constant 0 : index
      %c0_102 = arith.constant 0 : index
      %152 = vector.load %arg18[%c0_101, %c0_102] : memref<8x32xf32, #tpu.memory_space<vmem>>, vector<8x32xf32>
      tpu.vector_store %arg18[%c0_101, %c0_102], %151 {strides = array<i32>} : memref<8x32xf32, #tpu.memory_space<vmem>>, vector<8x32xf32>,
    } else {
    }
    %c0 = arith.constant 0 : index
    %c0_1 = arith.constant 0 : index
    %c0_2 = arith.constant 0 : index
    %3 = vector.load %arg4[%c0, %c0_1, %c0_2] : memref<1x8x32xf32, #tpu.memory_space<vmem>>, vector<1x8x32xf32>
    %4 = vector.shape_cast %3 : vector<1x8x32xf32> to vector<8x32xf32>
    %5 = arith.truncf %4 : vector<8x32xf32> to vector<8x32xbf16>
    %c0_3 = arith.constant 0 : index
    %c0_4 = arith.constant 0 : index
    %c0_5 = arith.constant 0 : index
    %6 = vector.load %arg5[%c0_3, %c0_4, %c0_5] : memref<1x8x32xf32, #tpu.memory_space<vmem>>, vector<1x8x32xf32>
    %7 = vector.shape_cast %6 : vector<1x8x32xf32> to vector<8x32xf32>
    %8 = arith.truncf %7 : vector<8x32xf32> to vector<8x32xbf16>
    %c0_6 = arith.constant 0 : index
    %c0_7 = arith.constant 0 : index
    %9 = vector.load %arg8[%c0_6, %c0_7] : memref<32x32xbf16, #tpu.memory_space<vmem>>, vector<32x32xbf16>
    %cst = arith.constant dense<0.000000e+00> : vector<8x32xf32>
    %10 = tpu.matmul %5, %9, %cst {dimension_numbers = #tpu.dot_dimension_numbers<[1], [0], [0], [1], [0, 0, 1, 1], [], []>} : vector<8x32xbf16>, vector<32x32xbf16>, vector<8x32xf32> -> vector<8x32xf32>
    %c0_8 = arith.constant 0 : index
    %c0_9 = arith.constant 0 : index
    %11 = vector.load %arg9[%c0_8, %c0_9] : memref<1x32xf32, #tpu.memory_space<vmem>>, vector<1x32xf32>
    %12 = vector.broadcast %11 : vector<1x32xf32> to vector<8x32xf32>
    %13 = arith.addf %10, %12 : vector<8x32xf32>
    %14 = arith.truncf %13 : vector<8x32xf32> to vector<8x32xbf16>
    %c0_10 = arith.constant 0 : index
    %c0_11 = arith.constant 0 : index
    %15 = vector.load %arg10[%c0_10, %c0_11] : memref<32x32xbf16, #tpu.memory_space<vmem>>, vector<32x32xbf16>
    %cst_12 = arith.constant dense<0.000000e+00> : vector<8x32xf32>
    %16 = tpu.matmul %8, %15, %cst_12 {dimension_numbers = #tpu.dot_dimension_numbers<[1], [0], [0], [1], [0, 0, 1, 1], [], []>} : vector<8x32xbf16>, vector<32x32xbf16>, vector<8x32xf32> -> vector<8x32xf32>
    %c0_13 = arith.constant 0 : index
    %c0_14 = arith.constant 0 : index
    %17 = vector.load %arg11[%c0_13, %c0_14] : memref<1x32xf32, #tpu.memory_space<vmem>>, vector<1x32xf32>
    %18 = vector.broadcast %17 : vector<1x32xf32> to vector<8x32xf32>
    %19 = arith.addf %16, %18 : vector<8x32xf32>
    %20 = arith.truncf %19 : vector<8x32xf32> to vector<8x32xbf16>
    %c0_15 = arith.constant 0 : index
    %c0_16 = arith.constant 0 : index
    %21 = vector.load %arg15[%c0_15, %c0_16] : memref<8x32xf32, #tpu.memory_space<vmem>>, vector<8x8xf32>
    %22 = arith.truncf %21 : vector<8x8xf32> to vector<8x8xbf16>
    %23 = vector.extract_strided_slice %14 {offsets = [0, 0], sizes = [8, 8], strides = [1, 1]} : vector<8x32xbf16> to vector<8x8xbf16>
    %24 = vector.extract_strided_slice %20 {offsets = [0, 0], sizes = [8, 8], strides = [1, 1]} : vector<8x32xbf16> to vector<8x8xbf16>
    %cst_17 = arith.constant dense<0.000000e+00> : vector<8x8xf32>
    %25 = tpu.matmul %22, %23, %cst_17 {dimension_numbers = #tpu.dot_dimension_numbers<[1], [1], [0], [0], [0, 0, 1, 0], [], []>} : vector<8x8xbf16>, vector<8x8xbf16>, vector<8x8xf32> -> vector<8x8xf32>
    %c0_18 = arith.constant 0 : index
    %c0_19 = arith.constant 0 : index
    %26 = vector.load %arg16[%c0_18, %c0_19] : memref<8x4xf32, #tpu.memory_space<vmem>>, vector<8x1xf32>
    %cst_20 = arith.constant dense<0xFF800000> : vector<8xf32>
    %27 = vector.multi_reduction <maximumf>, %25, %cst_20 [1] : vector<8x8xf32> to vector<8xf32>
    %28 = vector.shape_cast %27 : vector<8xf32> to vector<8x1xf32>
    %29 = arith.maximumf %26, %28 : vector<8x1xf32>
    %30 = arith.subf %26, %29 : vector<8x1xf32>
    %31 = math.exp %30 : vector<8x1xf32>
    %32 = vector.broadcast %29 : vector<8x1xf32> to vector<8x8xf32>
    %33 = arith.subf %25, %32 : vector<8x8xf32>
    %34 = math.exp %33 : vector<8x8xf32>
    %c0_21 = arith.constant 0 : index
    %c0_22 = arith.constant 0 : index
    %35 = vector.load %arg17[%c0_21, %c0_22] : memref<8x4xf32, #tpu.memory_space<vmem>>, vector<8x1xf32>
    %36 = arith.mulf %31, %35 : vector<8x1xf32>
    %cst_23 = arith.constant dense<0.000000e+00> : vector<8xf32>
    %37 = vector.multi_reduction <add>, %34, %cst_23 [1] : vector<8x8xf32> to vector<8xf32>
    %38 = vector.shape_cast %37 : vector<8xf32> to vector<8x1xf32>
    %39 = arith.addf %36, %38 : vector<8x1xf32>
    %c0_24 = arith.constant 0 : index
    %c0_25 = arith.constant 0 : index
    %40 = vector.load %arg17[%c0_24, %c0_25] : memref<8x4xf32, #tpu.memory_space<vmem>>, vector<8x1xf32>
    tpu.vector_store %arg17[%c0_24, %c0_25], %39 {strides = array<i32>} : memref<8x4xf32, #tpu.memory_space<vmem>>, vector<8x1xf32>,
    %c0_26 = arith.constant 0 : index
    %c0_27 = arith.constant 0 : index
    %41 = vector.load %arg18[%c0_26, %c0_27] : memref<8x32xf32, #tpu.memory_space<vmem>>, vector<8x8xf32>
    %42 = vector.broadcast %31 : vector<8x1xf32> to vector<8x8xf32>
    %43 = arith.mulf %42, %41 : vector<8x8xf32>
    %44 = arith.truncf %34 : vector<8x8xf32> to vector<8x8xbf16>
    %cst_28 = arith.constant dense<0.000000e+00> : vector<8x8xf32>
    %45 = tpu.matmul %44, %24, %cst_28 {dimension_numbers = #tpu.dot_dimension_numbers<[1], [0], [0], [1], [0, 0, 1, 1], [], []>} : vector<8x8xbf16>, vector<8x8xbf16>, vector<8x8xf32> -> vector<8x8xf32>
    %46 = arith.addf %43, %45 : vector<8x8xf32>
    %c0_29 = arith.constant 0 : index
    %c0_30 = arith.constant 0 : index
    %47 = vector.load %arg18[%c0_29, %c0_30] : memref<8x32xf32, #tpu.memory_space<vmem>>, vector<8x8xf32>
    tpu.vector_store %arg18[%c0_29, %c0_30], %46 {strides = array<i32>} : memref<8x32xf32, #tpu.memory_space<vmem>>, vector<8x8xf32>,
    %c0_31 = arith.constant 0 : index
    %c0_32 = arith.constant 0 : index
    %48 = vector.load %arg16[%c0_31, %c0_32] : memref<8x4xf32, #tpu.memory_space<vmem>>, vector<8x1xf32>
    tpu.vector_store %arg16[%c0_31, %c0_32], %29 {strides = array<i32>} : memref<8x4xf32, #tpu.memory_space<vmem>>, vector<8x1xf32>,
    %c0_33 = arith.constant 0 : index
    %c8 = arith.constant 8 : index
    %49 = vector.load %arg15[%c0_33, %c8] : memref<8x32xf32, #tpu.memory_space<vmem>>, vector<8x8xf32>
    %50 = arith.truncf %49 : vector<8x8xf32> to vector<8x8xbf16>
    %51 = vector.extract_strided_slice %14 {offsets = [0, 8], sizes = [8, 8], strides = [1, 1]} : vector<8x32xbf16> to vector<8x8xbf16>
    %52 = vector.extract_strided_slice %20 {offsets = [0, 8], sizes = [8, 8], strides = [1, 1]} : vector<8x32xbf16> to vector<8x8xbf16>
    %cst_34 = arith.constant dense<0.000000e+00> : vector<8x8xf32>
    %53 = tpu.matmul %50, %51, %cst_34 {dimension_numbers = #tpu.dot_dimension_numbers<[1], [1], [0], [0], [0, 0, 1, 0], [], []>} : vector<8x8xbf16>, vector<8x8xbf16>, vector<8x8xf32> -> vector<8x8xf32>
    %c0_35 = arith.constant 0 : index
    %c1 = arith.constant 1 : index
    %54 = vector.load %arg16[%c0_35, %c1] : memref<8x4xf32, #tpu.memory_space<vmem>>, vector<8x1xf32>
    %cst_36 = arith.constant dense<0xFF800000> : vector<8xf32>
    %55 = vector.multi_reduction <maximumf>, %53, %cst_36 [1] : vector<8x8xf32> to vector<8xf32>
    %56 = vector.shape_cast %55 : vector<8xf32> to vector<8x1xf32>
    %57 = arith.maximumf %54, %56 : vector<8x1xf32>
    %58 = arith.subf %54, %57 : vector<8x1xf32>
    %59 = math.exp %58 : vector<8x1xf32>
    %60 = vector.broadcast %57 : vector<8x1xf32> to vector<8x8xf32>
    %61 = arith.subf %53, %60 : vector<8x8xf32>
    %62 = math.exp %61 : vector<8x8xf32>
    %c0_37 = arith.constant 0 : index
    %c1_38 = arith.constant 1 : index
    %63 = vector.load %arg17[%c0_37, %c1_38] : memref<8x4xf32, #tpu.memory_space<vmem>>, vector<8x1xf32>
    %64 = arith.mulf %59, %63 : vector<8x1xf32>
    %cst_39 = arith.constant dense<0.000000e+00> : vector<8xf32>
    %65 = vector.multi_reduction <add>, %62, %cst_39 [1] : vector<8x8xf32> to vector<8xf32>
    %66 = vector.shape_cast %65 : vector<8xf32> to vector<8x1xf32>
    %67 = arith.addf %64, %66 : vector<8x1xf32>
    %c0_40 = arith.constant 0 : index
    %c1_41 = arith.constant 1 : index
    %68 = vector.load %arg17[%c0_40, %c1_41] : memref<8x4xf32, #tpu.memory_space<vmem>>, vector<8x1xf32>
    tpu.vector_store %arg17[%c0_40, %c1_41], %67 {strides = array<i32>} : memref<8x4xf32, #tpu.memory_space<vmem>>, vector<8x1xf32>,
    %c0_42 = arith.constant 0 : index
    %c8_43 = arith.constant 8 : index
    %69 = vector.load %arg18[%c0_42, %c8_43] : memref<8x32xf32, #tpu.memory_space<vmem>>, vector<8x8xf32>
    %70 = vector.broadcast %59 : vector<8x1xf32> to vector<8x8xf32>
    %71 = arith.mulf %70, %69 : vector<8x8xf32>
    %72 = arith.truncf %62 : vector<8x8xf32> to vector<8x8xbf16>
    %cst_44 = arith.constant dense<0.000000e+00> : vector<8x8xf32>
    %73 = tpu.matmul %72, %52, %cst_44 {dimension_numbers = #tpu.dot_dimension_numbers<[1], [0], [0], [1], [0, 0, 1, 1], [], []>} : vector<8x8xbf16>, vector<8x8xbf16>, vector<8x8xf32> -> vector<8x8xf32>
    %74 = arith.addf %71, %73 : vector<8x8xf32>
    %c0_45 = arith.constant 0 : index
    %c8_46 = arith.constant 8 : index
    %75 = vector.load %arg18[%c0_45, %c8_46] : memref<8x32xf32, #tpu.memory_space<vmem>>, vector<8x8xf32>
    tpu.vector_store %arg18[%c0_45, %c8_46], %74 {strides = array<i32>} : memref<8x32xf32, #tpu.memory_space<vmem>>, vector<8x8xf32>,
    %c0_47 = arith.constant 0 : index
    %c1_48 = arith.constant 1 : index
    %76 = vector.load %arg16[%c0_47, %c1_48] : memref<8x4xf32, #tpu.memory_space<vmem>>, vector<8x1xf32>
    tpu.vector_store %arg16[%c0_47, %c1_48], %57 {strides = array<i32>} : memref<8x4xf32, #tpu.memory_space<vmem>>, vector<8x1xf32>,
    %c0_49 = arith.constant 0 : index
    %c16 = arith.constant 16 : index
    %77 = vector.load %arg15[%c0_49, %c16] : memref<8x32xf32, #tpu.memory_space<vmem>>, vector<8x8xf32>
    %78 = arith.truncf %77 : vector<8x8xf32> to vector<8x8xbf16>
    %79 = vector.extract_strided_slice %14 {offsets = [0, 16], sizes = [8, 8], strides = [1, 1]} : vector<8x32xbf16> to vector<8x8xbf16>
    %80 = vector.extract_strided_slice %20 {offsets = [0, 16], sizes = [8, 8], strides = [1, 1]} : vector<8x32xbf16> to vector<8x8xbf16>
    %cst_50 = arith.constant dense<0.000000e+00> : vector<8x8xf32>
    %81 = tpu.matmul %78, %79, %cst_50 {dimension_numbers = #tpu.dot_dimension_numbers<[1], [1], [0], [0], [0, 0, 1, 0], [], []>} : vector<8x8xbf16>, vector<8x8xbf16>, vector<8x8xf32> -> vector<8x8xf32>
    %c0_51 = arith.constant 0 : index
    %c2 = arith.constant 2 : index
    %82 = vector.load %arg16[%c0_51, %c2] : memref<8x4xf32, #tpu.memory_space<vmem>>, vector<8x1xf32>
    %cst_52 = arith.constant dense<0xFF800000> : vector<8xf32>
    %83 = vector.multi_reduction <maximumf>, %81, %cst_52 [1] : vector<8x8xf32> to vector<8xf32>
    %84 = vector.shape_cast %83 : vector<8xf32> to vector<8x1xf32>
    %85 = arith.maximumf %82, %84 : vector<8x1xf32>
    %86 = arith.subf %82, %85 : vector<8x1xf32>
    %87 = math.exp %86 : vector<8x1xf32>
    %88 = vector.broadcast %85 : vector<8x1xf32> to vector<8x8xf32>
    %89 = arith.subf %81, %88 : vector<8x8xf32>
    %90 = math.exp %89 : vector<8x8xf32>
    %c0_53 = arith.constant 0 : index
    %c2_54 = arith.constant 2 : index
    %91 = vector.load %arg17[%c0_53, %c2_54] : memref<8x4xf32, #tpu.memory_space<vmem>>, vector<8x1xf32>
    %92 = arith.mulf %87, %91 : vector<8x1xf32>
    %cst_55 = arith.constant dense<0.000000e+00> : vector<8xf32>
    %93 = vector.multi_reduction <add>, %90, %cst_55 [1] : vector<8x8xf32> to vector<8xf32>
    %94 = vector.shape_cast %93 : vector<8xf32> to vector<8x1xf32>
    %95 = arith.addf %92, %94 : vector<8x1xf32>
    %c0_56 = arith.constant 0 : index
    %c2_57 = arith.constant 2 : index
    %96 = vector.load %arg17[%c0_56, %c2_57] : memref<8x4xf32, #tpu.memory_space<vmem>>, vector<8x1xf32>
    tpu.vector_store %arg17[%c0_56, %c2_57], %95 {strides = array<i32>} : memref<8x4xf32, #tpu.memory_space<vmem>>, vector<8x1xf32>,
    %c0_58 = arith.constant 0 : index
    %c16_59 = arith.constant 16 : index
    %97 = vector.load %arg18[%c0_58, %c16_59] : memref<8x32xf32, #tpu.memory_space<vmem>>, vector<8x8xf32>
    %98 = vector.broadcast %87 : vector<8x1xf32> to vector<8x8xf32>
    %99 = arith.mulf %98, %97 : vector<8x8xf32>
    %100 = arith.truncf %90 : vector<8x8xf32> to vector<8x8xbf16>
    %cst_60 = arith.constant dense<0.000000e+00> : vector<8x8xf32>
    %101 = tpu.matmul %100, %80, %cst_60 {dimension_numbers = #tpu.dot_dimension_numbers<[1], [0], [0], [1], [0, 0, 1, 1], [], []>} : vector<8x8xbf16>, vector<8x8xbf16>, vector<8x8xf32> -> vector<8x8xf32>
    %102 = arith.addf %99, %101 : vector<8x8xf32>
    %c0_61 = arith.constant 0 : index
    %c16_62 = arith.constant 16 : index
    %103 = vector.load %arg18[%c0_61, %c16_62] : memref<8x32xf32, #tpu.memory_space<vmem>>, vector<8x8xf32>
    tpu.vector_store %arg18[%c0_61, %c16_62], %102 {strides = array<i32>} : memref<8x32xf32, #tpu.memory_space<vmem>>, vector<8x8xf32>,
    %c0_63 = arith.constant 0 : index
    %c2_64 = arith.constant 2 : index
    %104 = vector.load %arg16[%c0_63, %c2_64] : memref<8x4xf32, #tpu.memory_space<vmem>>, vector<8x1xf32>
    tpu.vector_store %arg16[%c0_63, %c2_64], %85 {strides = array<i32>} : memref<8x4xf32, #tpu.memory_space<vmem>>, vector<8x1xf32>,
    %c0_65 = arith.constant 0 : index
    %c24 = arith.constant 24 : index
    %105 = vector.load %arg15[%c0_65, %c24] : memref<8x32xf32, #tpu.memory_space<vmem>>, vector<8x8xf32>
    %106 = arith.truncf %105 : vector<8x8xf32> to vector<8x8xbf16>
    %107 = vector.extract_strided_slice %14 {offsets = [0, 24], sizes = [8, 8], strides = [1, 1]} : vector<8x32xbf16> to vector<8x8xbf16>
    %108 = vector.extract_strided_slice %20 {offsets = [0, 24], sizes = [8, 8], strides = [1, 1]} : vector<8x32xbf16> to vector<8x8xbf16>
    %cst_66 = arith.constant dense<0.000000e+00> : vector<8x8xf32>
    %109 = tpu.matmul %106, %107, %cst_66 {dimension_numbers = #tpu.dot_dimension_numbers<[1], [1], [0], [0], [0, 0, 1, 0], [], []>} : vector<8x8xbf16>, vector<8x8xbf16>, vector<8x8xf32> -> vector<8x8xf32>
    %c0_67 = arith.constant 0 : index
    %c3 = arith.constant 3 : index
    %110 = vector.load %arg16[%c0_67, %c3] : memref<8x4xf32, #tpu.memory_space<vmem>>, vector<8x1xf32>
    %cst_68 = arith.constant dense<0xFF800000> : vector<8xf32>
    %111 = vector.multi_reduction <maximumf>, %109, %cst_68 [1] : vector<8x8xf32> to vector<8xf32>
    %112 = vector.shape_cast %111 : vector<8xf32> to vector<8x1xf32>
    %113 = arith.maximumf %110, %112 : vector<8x1xf32>
    %114 = arith.subf %110, %113 : vector<8x1xf32>
    %115 = math.exp %114 : vector<8x1xf32>
    %116 = vector.broadcast %113 : vector<8x1xf32> to vector<8x8xf32>
    %117 = arith.subf %109, %116 : vector<8x8xf32>
    %118 = math.exp %117 : vector<8x8xf32>
    %c0_69 = arith.constant 0 : index
    %c3_70 = arith.constant 3 : index
    %119 = vector.load %arg17[%c0_69, %c3_70] : memref<8x4xf32, #tpu.memory_space<vmem>>, vector<8x1xf32>
    %120 = arith.mulf %115, %119 : vector<8x1xf32>
    %cst_71 = arith.constant dense<0.000000e+00> : vector<8xf32>
    %121 = vector.multi_reduction <add>, %118, %cst_71 [1] : vector<8x8xf32> to vector<8xf32>
    %122 = vector.shape_cast %121 : vector<8xf32> to vector<8x1xf32>
    %123 = arith.addf %120, %122 : vector<8x1xf32>
    %c0_72 = arith.constant 0 : index
    %c3_73 = arith.constant 3 : index
    %124 = vector.load %arg17[%c0_72, %c3_73] : memref<8x4xf32, #tpu.memory_space<vmem>>, vector<8x1xf32>
    tpu.vector_store %arg17[%c0_72, %c3_73], %123 {strides = array<i32>} : memref<8x4xf32, #tpu.memory_space<vmem>>, vector<8x1xf32>,
    %c0_74 = arith.constant 0 : index
    %c24_75 = arith.constant 24 : index
    %125 = vector.load %arg18[%c0_74, %c24_75] : memref<8x32xf32, #tpu.memory_space<vmem>>, vector<8x8xf32>
    %126 = vector.broadcast %115 : vector<8x1xf32> to vector<8x8xf32>
    %127 = arith.mulf %126, %125 : vector<8x8xf32>
    %128 = arith.truncf %118 : vector<8x8xf32> to vector<8x8xbf16>
    %cst_76 = arith.constant dense<0.000000e+00> : vector<8x8xf32>
    %129 = tpu.matmul %128, %108, %cst_76 {dimension_numbers = #tpu.dot_dimension_numbers<[1], [0], [0], [1], [0, 0, 1, 1], [], []>} : vector<8x8xbf16>, vector<8x8xbf16>, vector<8x8xf32> -> vector<8x8xf32>
    %130 = arith.addf %127, %129 : vector<8x8xf32>
    %c0_77 = arith.constant 0 : index
    %c24_78 = arith.constant 24 : index
    %131 = vector.load %arg18[%c0_77, %c24_78] : memref<8x32xf32, #tpu.memory_space<vmem>>, vector<8x8xf32>
    tpu.vector_store %arg18[%c0_77, %c24_78], %130 {strides = array<i32>} : memref<8x32xf32, #tpu.memory_space<vmem>>, vector<8x8xf32>,
    %c0_79 = arith.constant 0 : index
    %c3_80 = arith.constant 3 : index
    %132 = vector.load %arg16[%c0_79, %c3_80] : memref<8x4xf32, #tpu.memory_space<vmem>>, vector<8x1xf32>
    tpu.vector_store %arg16[%c0_79, %c3_80], %113 {strides = array<i32>} : memref<8x4xf32, #tpu.memory_space<vmem>>, vector<8x1xf32>,
    %c0_i32_81 = arith.constant 0 : i32
    %133 = arith.cmpi eq, %arg2, %c0_i32_81 : i32
    %134 = arith.extui %133 : i1 to i32
    %c0_i32_82 = arith.constant 0 : i32
    %135 = arith.cmpi ne, %134, %c0_i32_82 : i32
    scf.if %135 {
      %c0_83 = arith.constant 0 : index
      %c0_84 = arith.constant 0 : index
      %136 = vector.load %arg17[%c0_83, %c0_84] : memref<8x4xf32, #tpu.memory_space<vmem>>, vector<8x1xf32>
      %137 = tpu.reciprocal %136 {approx = true} : vector<8x1xf32> -> vector<8x1xf32>
      %c0_85 = arith.constant 0 : index
      %c0_86 = arith.constant 0 : index
      %138 = vector.load %arg18[%c0_85, %c0_86] : memref<8x32xf32, #tpu.memory_space<vmem>>, vector<8x8xf32>
      %139 = vector.broadcast %137 : vector<8x1xf32> to vector<8x8xf32>
      %140 = arith.mulf %138, %139 : vector<8x8xf32>
      %c0_87 = arith.constant 0 : index
      %c0_88 = arith.constant 0 : index
      %141 = vector.load %arg18[%c0_87, %c0_88] : memref<8x32xf32, #tpu.memory_space<vmem>>, vector<8x8xf32>
      tpu.vector_store %arg18[%c0_87, %c0_88], %140 {strides = array<i32>} : memref<8x32xf32, #tpu.memory_space<vmem>>, vector<8x8xf32>,
      %c0_89 = arith.constant 0 : index
      %c1_90 = arith.constant 1 : index
      %142 = vector.load %arg17[%c0_89, %c1_90] : memref<8x4xf32, #tpu.memory_space<vmem>>, vector<8x1xf32>
      %143 = tpu.reciprocal %142 {approx = true} : vector<8x1xf32> -> vector<8x1xf32>
      %c0_91 = arith.constant 0 : index
      %c8_92 = arith.constant 8 : index
      %144 = vector.load %arg18[%c0_91, %c8_92] : memref<8x32xf32, #tpu.memory_space<vmem>>, vector<8x8xf32>
      %145 = vector.broadcast %143 : vector<8x1xf32> to vector<8x8xf32>
      %146 = arith.mulf %144, %145 : vector<8x8xf32>
      %c0_93 = arith.constant 0 : index
      %c8_94 = arith.constant 8 : index
      %147 = vector.load %arg18[%c0_93, %c8_94] : memref<8x32xf32, #tpu.memory_space<vmem>>, vector<8x8xf32>
      tpu.vector_store %arg18[%c0_93, %c8_94], %146 {strides = array<i32>} : memref<8x32xf32, #tpu.memory_space<vmem>>, vector<8x8xf32>,
      %c0_95 = arith.constant 0 : index
      %c2_96 = arith.constant 2 : index
      %148 = vector.load %arg17[%c0_95, %c2_96] : memref<8x4xf32, #tpu.memory_space<vmem>>, vector<8x1xf32>
      %149 = tpu.reciprocal %148 {approx = true} : vector<8x1xf32> -> vector<8x1xf32>
      %c0_97 = arith.constant 0 : index
      %c16_98 = arith.constant 16 : index
      %150 = vector.load %arg18[%c0_97, %c16_98] : memref<8x32xf32, #tpu.memory_space<vmem>>, vector<8x8xf32>
      %151 = vector.broadcast %149 : vector<8x1xf32> to vector<8x8xf32>
      %152 = arith.mulf %150, %151 : vector<8x8xf32>
      %c0_99 = arith.constant 0 : index
      %c16_100 = arith.constant 16 : index
      %153 = vector.load %arg18[%c0_99, %c16_100] : memref<8x32xf32, #tpu.memory_space<vmem>>, vector<8x8xf32>
      tpu.vector_store %arg18[%c0_99, %c16_100], %152 {strides = array<i32>} : memref<8x32xf32, #tpu.memory_space<vmem>>, vector<8x8xf32>,
      %c0_101 = arith.constant 0 : index
      %c3_102 = arith.constant 3 : index
      %154 = vector.load %arg17[%c0_101, %c3_102] : memref<8x4xf32, #tpu.memory_space<vmem>>, vector<8x1xf32>
      %155 = tpu.reciprocal %154 {approx = true} : vector<8x1xf32> -> vector<8x1xf32>
      %c0_103 = arith.constant 0 : index
      %c24_104 = arith.constant 24 : index
      %156 = vector.load %arg18[%c0_103, %c24_104] : memref<8x32xf32, #tpu.memory_space<vmem>>, vector<8x8xf32>
      %157 = vector.broadcast %155 : vector<8x1xf32> to vector<8x8xf32>
      %158 = arith.mulf %156, %157 : vector<8x8xf32>
      %c0_105 = arith.constant 0 : index
      %c24_106 = arith.constant 24 : index
      %159 = vector.load %arg18[%c0_105, %c24_106] : memref<8x32xf32, #tpu.memory_space<vmem>>, vector<8x8xf32>
      tpu.vector_store %arg18[%c0_105, %c24_106], %158 {strides = array<i32>} : memref<8x32xf32, #tpu.memory_space<vmem>>, vector<8x8xf32>,
      %c0_107 = arith.constant 0 : index
      %c0_108 = arith.constant 0 : index
      %160 = vector.load %arg18[%c0_107, %c0_108] : memref<8x32xf32, #tpu.memory_space<vmem>>, vector<8x32xf32>
      %161 = arith.truncf %160 : vector<8x32xf32> to vector<8x32xbf16>
      %c0_109 = arith.constant 0 : index
      %c0_110 = arith.constant 0 : index
      %162 = vector.load %arg12[%c0_109, %c0_110] : memref<32x32xbf16, #tpu.memory_space<vmem>>, vector<32x32xbf16>
      %cst_111 = arith.constant dense<0.000000e+00> : vector<8x32xf32>
      %163 = tpu.matmul %161, %162, %cst_111 {dimension_numbers = #tpu.dot_dimension_numbers<[1], [0], [0], [1], [0, 0, 1, 1], [], []>} : vector<8x32xbf16>, vector<32x32xbf16>, vector<8x32xf32> -> vector<8x32xf32>
      %c0_112 = arith.constant 0 : index
      %c0_113 = arith.constant 0 : index
      %164 = vector.load %arg13[%c0_112, %c0_113] : memref<1x32xf32, #tpu.memory_space<vmem>>, vector<1x32xf32>
      %165 = vector.broadcast %164 : vector<1x32xf32> to vector<8x32xf32>
      %166 = arith.addf %163, %165 : vector<8x32xf32>
      %c0_114 = arith.constant 0 : index
      %c0_115 = arith.constant 0 : index
      %c0_116 = arith.constant 0 : index
      %167 = vector.load %arg14[%c0_114, %c0_115, %c0_116] : memref<1x8x32xf32, #tpu.memory_space<vmem>>, vector<1x8x32xf32>
      %168 = vector.shape_cast %167 : vector<1x8x32xf32> to vector<8x32xf32>
      %169 = vector.shape_cast %166 : vector<8x32xf32> to vector<1x8x32xf32>
      tpu.vector_store %arg14[%c0_114, %c0_115, %c0_116], %169 {strides = array<i32>} : memref<1x8x32xf32, #tpu.memory_space<vmem>>, vector<1x8x32xf32>,
    } else {
    }
    return
  }
  func.func @transform_0(%arg0: i32, %arg1: i32, %arg2: i32) -> (i32, i32, i32) {
    %c0_i32 = arith.constant 0 : i32
    %c0_i32_0 = arith.constant 0 : i32
    return %arg0, %arg1, %c0_i32 : i32, i32, i32
  }
  func.func @transform_1(%arg0: i32, %arg1: i32, %arg2: i32) -> (i32, i32, i32) {
    %c0_i32 = arith.constant 0 : i32
    %c0_i32_0 = arith.constant 0 : i32
    return %arg0, %arg2, %c0_i32 : i32, i32, i32
  }
  func.func @transform_2(%arg0: i32, %arg1: i32, %arg2: i32) -> (i32, i32, i32) {
    %c0_i32 = arith.constant 0 : i32
    %c0_i32_0 = arith.constant 0 : i32
    return %arg0, %arg2, %c0_i32 : i32, i32, i32
  }
  func.func @transform_3(%arg0: i32, %arg1: i32, %arg2: i32) -> (i32, i32) {
    %c0_i32 = arith.constant 0 : i32
    %c0_i32_0 = arith.constant 0 : i32
    %c0_i32_1 = arith.constant 0 : i32
    return %c0_i32, %c0_i32_0 : i32, i32
  }
  func.func @transform_4(%arg0: i32, %arg1: i32, %arg2: i32) -> (i32, i32) {
    %c0_i32 = arith.constant 0 : i32
    %c0_i32_0 = arith.constant 0 : i32
    %c0_i32_1 = arith.constant 0 : i32
    return %c0_i32, %c0_i32_0 : i32, i32
  }
  func.func @transform_5(%arg0: i32, %arg1: i32, %arg2: i32) -> (i32, i32) {
    %c0_i32 = arith.constant 0 : i32
    %c0_i32_0 = arith.constant 0 : i32
    %c0_i32_1 = arith.constant 0 : i32
    return %c0_i32, %c0_i32_0 : i32, i32
  }
  func.func @transform_6(%arg0: i32, %arg1: i32, %arg2: i32) -> (i32, i32) {
    %c0_i32 = arith.constant 0 : i32
    %c0_i32_0 = arith.constant 0 : i32
    %c0_i32_1 = arith.constant 0 : i32
    return %c0_i32, %c0_i32_0 : i32, i32
  }
  func.func @transform_7(%arg0: i32, %arg1: i32, %arg2: i32) -> (i32, i32) {
    %c0_i32 = arith.constant 0 : i32
    %c0_i32_0 = arith.constant 0 : i32
    %c0_i32_1 = arith.constant 0 : i32
    return %c0_i32, %c0_i32_0 : i32, i32
  }
  func.func @transform_8(%arg0: i32, %arg1: i32, %arg2: i32) -> (i32, i32) {
    %c0_i32 = arith.constant 0 : i32
    %c0_i32_0 = arith.constant 0 : i32
    %c0_i32_1 = arith.constant 0 : i32
    return %c0_i32, %c0_i32_0 : i32, i32
  }
  func.func @transform_9(%arg0: i32, %arg1: i32, %arg2: i32) -> (i32, i32) {
    %c0_i32 = arith.constant 0 : i32
    %c0_i32_0 = arith.constant 0 : i32
    %c0_i32_1 = arith.constant 0 : i32
    return %c0_i32, %c0_i32_0 : i32, i32
  }
  func.func @transform_10(%arg0: i32, %arg1: i32, %arg2: i32) -> (i32, i32) {
    %c0_i32 = arith.constant 0 : i32
    %c0_i32_0 = arith.constant 0 : i32
    %c0_i32_1 = arith.constant 0 : i32
    return %c0_i32, %c0_i32_0 : i32, i32
  }
  func.func @transform_11(%arg0: i32, %arg1: i32, %arg2: i32) -> (i32, i32, i32) {
    %c0_i32 = arith.constant 0 : i32
    %c0_i32_0 = arith.constant 0 : i32
    return %arg0, %arg1, %c0_i32 : i32, i32, i32
  }
}

</mosaic_0001>

<llo_original>
// kernel: tpu_custom_call.1
$region0: #{tpu_custom_call.1}
  #allocation0 [shape = 'u32[]', space=smem, size = 0x4, offset = 0x4, fixed_abs, tag = 'smem constant byte address 0x4 - core index']
  #allocation1 [shape = 'u32[144,128]{1,0:T(1,128)}', space=vmem, size = 0x12000, scoped, tag = 'internal scratch']
  #allocation2 [shape = 'f32[8,32]{1,0:T(8,128)}', space=vmem, size = 0x1000, scoped, tag = 'scratch operand']
  #allocation3 [shape = 'f32[8,4]{1,0:T(8,128)}', space=vmem, size = 0x1000, scoped, tag = 'scratch operand']
  #allocation4 [shape = 'f32[8,4]{1,0:T(8,128)}', space=vmem, size = 0x1000, scoped, tag = 'scratch operand']
  #allocation5 [shape = 'f32[8,32]{1,0:T(8,128)}', space=vmem, size = 0x1000, scoped, tag = 'scratch operand']
  %s0 = inlined_call_operand.hbm [shape: f32[2,8,32], index: 0, kind: input, shape index: {}]
  %s1 = inlined_call_operand.hbm [shape: f32[2,8,32], index: 1, kind: input, shape index: {}]
  %s2 = inlined_call_operand.hbm [shape: f32[2,8,32], index: 2, kind: input, shape index: {}]
  %s3 = inlined_call_operand.hbm [shape: bf16[32,32], index: 3, kind: input, shape index: {}]
  %s4 = inlined_call_operand.vmem [shape: f32[1,32], index: 4, kind: input, shape index: {}]
  %s5 = inlined_call_operand.vmem [shape: bf16[32,32], index: 5, kind: input, shape index: {}]
  %s6 = inlined_call_operand.vmem [shape: f32[1,32], index: 6, kind: input, shape index: {}]
  %s7 = inlined_call_operand.hbm [shape: bf16[32,32], index: 7, kind: input, shape index: {}]
  %s8 = inlined_call_operand.hbm [shape: f32[1,32], index: 8, kind: input, shape index: {}]
  %s9 = inlined_call_operand.vmem [shape: bf16[32,32], index: 9, kind: input, shape index: {}]
  %s10 = inlined_call_operand.vmem [shape: f32[1,32], index: 10, kind: input, shape index: {}]
  %s11 = inlined_call_operand.hbm [shape: f32[2,8,32], index: 11, kind: output, shape index: {}]
  %s12 = sld [smem:[#allocation0]]
  $region109: #{tpu_custom_call.1} parent=0
    _
  %s14 = ssub.s32 1, %s12
  %s15 = scalar_select 0, %s14, %s12
  $region1: #{tpu_custom_call.1} parent=0
    #allocation6 [shape = 'u8[8192]{0}', space=vmem, size = 0x2000, scoped, tag = 'input window, operand 0']
    #allocation7 [shape = 's32[2]{0}', space=sflag, size = 0x8, scoped, tag = 'scoped memory for tpu_custom_call.1']
    #allocation8 [shape = 's32[2]{0}', space=sflag, size = 0x8, scoped, tag = 'scoped memory for tpu_custom_call.1']
    #allocation9 [shape = 'u8[8192]{0}', space=vmem, size = 0x2000, scoped, tag = 'input window, operand 1']
    #allocation10 [shape = 's32[2]{0}', space=sflag, size = 0x8, scoped, tag = 'scoped memory for tpu_custom_call.1']
    #allocation11 [shape = 'u8[8192]{0}', space=vmem, size = 0x2000, scoped, tag = 'input window, operand 2']
    #allocation12 [shape = 'u8[8192]{0}', space=vmem, size = 0x2000, scoped, tag = 'input window, operand 3, single buffered']
    #allocation13 [shape = 's32[1]{0}', space=sflag, size = 0x4, scoped, tag = 'scoped memory for tpu_custom_call.1']
    #allocation14 [shape = 'u8[8192]{0}', space=vmem, size = 0x2000, scoped, tag = 'input window, operand 7, single buffered']
    #allocation15 [shape = 'u8[512]{0}', space=vmem, size = 0x400, scoped, tag = 'input window, operand 8, single buffered']
    #allocation16 [shape = 's32[1]{0}', space=sflag, size = 0x4, scoped, tag = 'scoped memory for tpu_custom_call.1']
    #allocation17 [shape = 'u8[8192]{0}', space=vmem, size = 0x2000, scoped, tag = 'output window, operand 0']
    %16 = vsyncpa [#allocation7], 0
    %s17 = scalar_lea.sflag [#allocation7], 1
    %18 = vsyncpa %s17, 0
    %19 = vsyncpa [#allocation10], 0
    %s20 = scalar_lea.sflag [#allocation10], 1
    %21 = vsyncpa %s20, 0
    %22 = vsyncpa [#allocation13], 0
    %23 = vsyncpa [#allocation16], 0
    %24 = vsyncpa [#allocation8], 0
    %s25 = scalar_lea.sflag [#allocation8], 1
    %26 = vsyncpa %s25, 0
    loop: start=0, step=1, limit=4
    $region2: #{tpu_custom_call.1} parent=1 // loop_pre_header
      _
    $region3: #{tpu_custom_call.1} parent=1 // loop_header
      %s28 = sphi 0, %s32
      %p29 = scmp.ge.s32.totalorder %s28, 4
      %s35 = sphi 0, %s54
      %s36 = sphi 0, %s50
      %s37 = sphi 0, %s46
      %s38 = sphi 0, %s35
      %s39 = sphi 0, %s36
      %s40 = sphi 0, %s37
      %s41 = sphi 0, %s38
      %s42 = sphi 0, %s39
      %s43 = sphi 0, %s40
      %s59 = sphi 0, %s61
      %s62 = sphi 0, %s59
      %s63 = sphi 0, %s62
      %s79 = sphi 0, %s63
      %s87 = sphi 0, %s89
      %s90 = sphi 0, %s87
      %s91 = sphi 0, %s90
      %s107 = sphi 0, %s91
      %s115 = sphi 0, %s117
      %s118 = sphi 0, %s115
      %s119 = sphi 0, %s118
      %s135 = sphi 0, %s119
      %s139 = sphi 0, %s139
      %s141 = sphi 0, %s139
      %s142 = sphi 0, %s141
      %s156 = sphi 0, %s142
      %s160 = sphi 0, %s160
      %s162 = sphi 0, %s160
      %s163 = sphi 0, %s162
      %s177 = sphi 0, %s163
      %s181 = sphi 0, %s181
      %s183 = sphi 0, %s181
      %s184 = sphi 0, %s183
      %s198 = sphi 0, %s184
      %s202 = sphi 0, %s202
      %s204 = sphi 0, %s202
      %s205 = sphi 0, %s204
      %s219 = sphi 0, %s205
      %s223 = sphi 0, %s223
      %s225 = sphi 0, %s223
      %s226 = sphi 0, %s225
      %s240 = sphi 0, %s226
      %s244 = sphi 0, %s244
      %s246 = sphi 0, %s244
      %s247 = sphi 0, %s246
      %s261 = sphi 0, %s247
      %s265 = sphi 0, %s265
      %s267 = sphi 0, %s265
      %s268 = sphi 0, %s267
      %s282 = sphi 0, %s268
      %s286 = sphi 0, %s286
      %s288 = sphi 0, %s286
      %s289 = sphi 0, %s288
      %s303 = sphi 0, %s289
      %s311 = sphi 0, %s313
      %s314 = sphi 0, %s311
      %s315 = sphi 0, %s314
      %s331 = sphi 0, %s315
    $region4: #{tpu_custom_call.1} parent=1 // loop_header_branch
      %31 = sbr.rel (%p29) target = $region8
    $region5: #{tpu_custom_call.1} parent=1 // loop_body
      %s33 = ssub.s32 %s28, 1
      %s34 = ssub.s32 %s28, 2
      %s44 = sadd.s32 1, %s37
      %p45 = scmp.ge.s32.totalorder %s44, 1
      %s46 = scalar_select %p45, 0, %s44
      %s47 = sadd.s32 1, %s36
      %s48 = scalar_select %p45, %s47, %s36
      %p49 = scmp.ge.s32.totalorder %s48, 1
      %s50 = scalar_select %p49, 0, %s48
      %s51 = sadd.s32 1, %s35
      %s52 = scalar_select %p49, %s51, %s35
      %p53 = scmp.ge.s32.totalorder %s52, 2
      %s54 = scalar_select %p53, 0, %s52
      %s55 = ssub.s32 %s35, %s54
      %s56 = ssub.s32 %s36, %s50
      %s57 = sor.u32 %s55, %s56
      %p58 = scmp.eq.s32.totalorder %s57, 0
      %s60 = sadd.s32 %s59, 1
      %s61 = scalar_select %p58, %s59, %s60
      %p64 = pneg %p58
      %p65 = scmp.eq.s32.totalorder %s28, 1
      %p66 = por %p64, %p65
      %p67 = scmp.ne.s32.totalorder %s59, %s62
      %p68 = scmp.eq.s32.totalorder %s28, 0
      %p69 = por %p67, %p68
      %p70 = scmp.ne.s32.totalorder %s59, %s62
      %p71 = scmp.eq.s32.totalorder %s33, 1
      %p72 = por %p70, %p71
      %p73 = scmp.ne.s32.totalorder %s62, %s63
      %p74 = scmp.eq.s32.totalorder %s33, 0
      %p75 = por %p73, %p74
      %p76 = scmp.ne.s32.totalorder %s62, %s63
      %p77 = scmp.eq.s32.totalorder %s34, 1
      %p78 = por %p76, %p77
      %p80 = scmp.ne.s32.totalorder %s63, %s79
      %p81 = scmp.eq.s32.totalorder %s34, 0
      %p82 = por %p80, %p81
      %s83 = ssub.s32 %s35, %s54
      %s84 = ssub.s32 %s37, %s46
      %s85 = sor.u32 %s83, %s84
      %p86 = scmp.eq.s32.totalorder %s85, 0
      %s88 = sadd.s32 %s87, 1
      %s89 = scalar_select %p86, %s87, %s88
      %p92 = pneg %p86
      %p93 = scmp.eq.s32.totalorder %s28, 1
      %p94 = por %p92, %p93
      %p95 = scmp.ne.s32.totalorder %s87, %s90
      %p96 = scmp.eq.s32.totalorder %s28, 0
      %p97 = por %p95, %p96
      %p98 = scmp.ne.s32.totalorder %s87, %s90
      %p99 = scmp.eq.s32.totalorder %s33, 1
      %p100 = por %p98, %p99
      %p101 = scmp.ne.s32.totalorder %s90, %s91
      %p102 = scmp.eq.s32.totalorder %s33, 0
      %p103 = por %p101, %p102
      %p104 = scmp.ne.s32.totalorder %s90, %s91
      %p105 = scmp.eq.s32.totalorder %s34, 1
      %p106 = por %p104, %p105
      %p108 = scmp.ne.s32.totalorder %s91, %s107
      %p109 = scmp.eq.s32.totalorder %s34, 0
      %p110 = por %p108, %p109
      %s111 = ssub.s32 %s35, %s54
      %s112 = ssub.s32 %s37, %s46
      %s113 = sor.u32 %s111, %s112
      %p114 = scmp.eq.s32.totalorder %s113, 0
      %s116 = sadd.s32 %s115, 1
      %s117 = scalar_select %p114, %s115, %s116
      %p120 = pneg %p114
      %p121 = scmp.eq.s32.totalorder %s28, 1
      %p122 = por %p120, %p121
      %p123 = scmp.ne.s32.totalorder %s115, %s118
      %p124 = scmp.eq.s32.totalorder %s28, 0
      %p125 = por %p123, %p124
      %p126 = scmp.ne.s32.totalorder %s115, %s118
      %p127 = scmp.eq.s32.totalorder %s33, 1
      %p128 = por %p126, %p127
      %p129 = scmp.ne.s32.totalorder %s118, %s119
      %p130 = scmp.eq.s32.totalorder %s33, 0
      %p131 = por %p129, %p130
      %p132 = scmp.ne.s32.totalorder %s118, %s119
      %p133 = scmp.eq.s32.totalorder %s34, 1
      %p134 = por %p132, %p133
      %p136 = scmp.ne.s32.totalorder %s119, %s135
      %p137 = scmp.eq.s32.totalorder %s34, 0
      %p138 = por %p136, %p137
      %s140 = sadd.s32 %s139, 1
      %p143 = scmp.eq.s32.totalorder %s28, 1
      %p144 = scmp.ne.s32.totalorder %s139, %s141
      %p145 = scmp.eq.s32.totalorder %s28, 0
      %p146 = por %p144, %p145
      %p147 = scmp.ne.s32.totalorder %s139, %s141
      %p148 = scmp.eq.s32.totalorder %s33, 1
      %p149 = por %p147, %p148
      %p150 = scmp.ne.s32.totalorder %s141, %s142
      %p151 = scmp.eq.s32.totalorder %s33, 0
      %p152 = por %p150, %p151
      %p153 = scmp.ne.s32.totalorder %s141, %s142
      %p154 = scmp.eq.s32.totalorder %s34, 1
      %p155 = por %p153, %p154
      %p157 = scmp.ne.s32.totalorder %s142, %s156
      %p158 = scmp.eq.s32.totalorder %s34, 0
      %p159 = por %p157, %p158
      %s161 = sadd.s32 %s160, 1
      %p164 = scmp.eq.s32.totalorder %s28, 1
      %p165 = scmp.ne.s32.totalorder %s160, %s162
      %p166 = scmp.eq.s32.totalorder %s28, 0
      %p167 = por %p165, %p166
      %p168 = scmp.ne.s32.totalorder %s160, %s162
      %p169 = scmp.eq.s32.totalorder %s33, 1
      %p170 = por %p168, %p169
      %p171 = scmp.ne.s32.totalorder %s162, %s163
      %p172 = scmp.eq.s32.totalorder %s33, 0
      %p173 = por %p171, %p172
      %p174 = scmp.ne.s32.totalorder %s162, %s163
      %p175 = scmp.eq.s32.totalorder %s34, 1
      %p176 = por %p174, %p175
      %p178 = scmp.ne.s32.totalorder %s163, %s177
      %p179 = scmp.eq.s32.totalorder %s34, 0
      %p180 = por %p178, %p179
      %s182 = sadd.s32 %s181, 1
      %p185 = scmp.eq.s32.totalorder %s28, 1
      %p186 = scmp.ne.s32.totalorder %s181, %s183
      %p187 = scmp.eq.s32.totalorder %s28, 0
      %p188 = por %p186, %p187
      %p189 = scmp.ne.s32.totalorder %s181, %s183
      %p190 = scmp.eq.s32.totalorder %s33, 1
      %p191 = por %p189, %p190
      %p192 = scmp.ne.s32.totalorder %s183, %s184
      %p193 = scmp.eq.s32.totalorder %s33, 0
      %p194 = por %p192, %p193
      %p195 = scmp.ne.s32.totalorder %s183, %s184
      %p196 = scmp.eq.s32.totalorder %s34, 1
      %p197 = por %p195, %p196
      %p199 = scmp.ne.s32.totalorder %s184, %s198
      %p200 = scmp.eq.s32.totalorder %s34, 0
      %p201 = por %p199, %p200
      %s203 = sadd.s32 %s202, 1
      %p206 = scmp.eq.s32.totalorder %s28, 1
      %p207 = scmp.ne.s32.totalorder %s202, %s204
      %p208 = scmp.eq.s32.totalorder %s28, 0
      %p209 = por %p207, %p208
      %p210 = scmp.ne.s32.totalorder %s202, %s204
      %p211 = scmp.eq.s32.totalorder %s33, 1
      %p212 = por %p210, %p211
      %p213 = scmp.ne.s32.totalorder %s204, %s205
      %p214 = scmp.eq.s32.totalorder %s33, 0
      %p215 = por %p213, %p214
      %p216 = scmp.ne.s32.totalorder %s204, %s205
      %p217 = scmp.eq.s32.totalorder %s34, 1
      %p218 = por %p216, %p217
      %p220 = scmp.ne.s32.totalorder %s205, %s219
      %p221 = scmp.eq.s32.totalorder %s34, 0
      %p222 = por %p220, %p221
      %s224 = sadd.s32 %s223, 1
      %p227 = scmp.eq.s32.totalorder %s28, 1
      %p228 = scmp.ne.s32.totalorder %s223, %s225
      %p229 = scmp.eq.s32.totalorder %s28, 0
      %p230 = por %p228, %p229
      %p231 = scmp.ne.s32.totalorder %s223, %s225
      %p232 = scmp.eq.s32.totalorder %s33, 1
      %p233 = por %p231, %p232
      %p234 = scmp.ne.s32.totalorder %s225, %s226
      %p235 = scmp.eq.s32.totalorder %s33, 0
      %p236 = por %p234, %p235
      %p237 = scmp.ne.s32.totalorder %s225, %s226
      %p238 = scmp.eq.s32.totalorder %s34, 1
      %p239 = por %p237, %p238
      %p241 = scmp.ne.s32.totalorder %s226, %s240
      %p242 = scmp.eq.s32.totalorder %s34, 0
      %p243 = por %p241, %p242
      %s245 = sadd.s32 %s244, 1
      %p248 = scmp.eq.s32.totalorder %s28, 1
      %p249 = scmp.ne.s32.totalorder %s244, %s246
      %p250 = scmp.eq.s32.totalorder %s28, 0
      %p251 = por %p249, %p250
      %p252 = scmp.ne.s32.totalorder %s244, %s246
      %p253 = scmp.eq.s32.totalorder %s33, 1
      %p254 = por %p252, %p253
      %p255 = scmp.ne.s32.totalorder %s246, %s247
      %p256 = scmp.eq.s32.totalorder %s33, 0
      %p257 = por %p255, %p256
      %p258 = scmp.ne.s32.totalorder %s246, %s247
      %p259 = scmp.eq.s32.totalorder %s34, 1
      %p260 = por %p258, %p259
      %p262 = scmp.ne.s32.totalorder %s247, %s261
      %p263 = scmp.eq.s32.totalorder %s34, 0
      %p264 = por %p262, %p263
      %s266 = sadd.s32 %s265, 1
      %p269 = scmp.eq.s32.totalorder %s28, 1
      %p270 = scmp.ne.s32.totalorder %s265, %s267
      %p271 = scmp.eq.s32.totalorder %s28, 0
      %p272 = por %p270, %p271
      %p273 = scmp.ne.s32.totalorder %s265, %s267
      %p274 = scmp.eq.s32.totalorder %s33, 1
      %p275 = por %p273, %p274
      %p276 = scmp.ne.s32.totalorder %s267, %s268
      %p277 = scmp.eq.s32.totalorder %s33, 0
      %p278 = por %p276, %p277
      %p279 = scmp.ne.s32.totalorder %s267, %s268
      %p280 = scmp.eq.s32.totalorder %s34, 1
      %p281 = por %p279, %p280
      %p283 = scmp.ne.s32.totalorder %s268, %s282
      %p284 = scmp.eq.s32.totalorder %s34, 0
      %p285 = por %p283, %p284
      %s287 = sadd.s32 %s286, 1
      %p290 = scmp.eq.s32.totalorder %s28, 1
      %p291 = scmp.ne.s32.totalorder %s286, %s288
      %p292 = scmp.eq.s32.totalorder %s28, 0
      %p293 = por %p291, %p292
      %p294 = scmp.ne.s32.totalorder %s286, %s288
      %p295 = scmp.eq.s32.totalorder %s33, 1
      %p296 = por %p294, %p295
      %p297 = scmp.ne.s32.totalorder %s288, %s289
      %p298 = scmp.eq.s32.totalorder %s33, 0
      %p299 = por %p297, %p298
      %p300 = scmp.ne.s32.totalorder %s288, %s289
      %p301 = scmp.eq.s32.totalorder %s34, 1
      %p302 = por %p300, %p301
      %p304 = scmp.ne.s32.totalorder %s289, %s303
      %p305 = scmp.eq.s32.totalorder %s34, 0
      %p306 = por %p304, %p305
      %s307 = ssub.s32 %s35, %s54
      %s308 = ssub.s32 %s36, %s50
      %s309 = sor.u32 %s307, %s308
      %p310 = scmp.eq.s32.totalorder %s309, 0
      %s312 = sadd.s32 %s311, 1
      %s313 = scalar_select %p310, %s311, %s312
      %p316 = pneg %p310
      %p317 = scmp.eq.s32.totalorder %s28, 1
      %p318 = por %p316, %p317
      %p319 = scmp.ne.s32.totalorder %s311, %s314
      %p320 = scmp.eq.s32.totalorder %s28, 0
      %p321 = por %p319, %p320
      %p322 = scmp.ne.s32.totalorder %s311, %s314
      %p323 = scmp.eq.s32.totalorder %s33, 1
      %p324 = por %p322, %p323
      %p325 = scmp.ne.s32.totalorder %s314, %s315
      %p326 = scmp.eq.s32.totalorder %s33, 0
      %p327 = por %p325, %p326
      %p328 = scmp.ne.s32.totalorder %s314, %s315
      %p329 = scmp.eq.s32.totalorder %s34, 1
      %p330 = por %p328, %p329
      %p332 = scmp.ne.s32.totalorder %s315, %s331
      %p333 = scmp.eq.s32.totalorder %s34, 0
      %p334 = por %p332, %p333
      %p335 = scmp.le.s32.totalorder 1, %s28
      %p336 = scmp.lt.s32.totalorder %s28, 3
      %p337 = pnand %p335, %p336
      %p338 = pneg %p337
      // Predicated region
      $region9: #{tpu_custom_call.1} parent=5 // pred_check
        _
      $region10: #{tpu_custom_call.1} parent=5 // pred_check_branch
        %340 = sbr.rel (%p337) target = $region12
      $region11: #{tpu_custom_call.1} parent=5 // pred_region
        %s341 = ssub.s32 %s28, 1
        // Predicated region
        $region13: #{tpu_custom_call.1} parent=11 // pred_check
          %p342 = pneg %p152
        $region14: #{tpu_custom_call.1} parent=11 // pred_check_branch
          %344 = sbr.rel (%p342) target = $region16
        $region15: #{tpu_custom_call.1} parent=11 // pred_region
          %s346 = ssub.s32 256, 256
          %347 = vsyncadd [#allocation13], %s346
          %s348 = sshll.u32 [#allocation12], 4
          %s349 = int_to_ptr.vmem [resolvable:$true] %s348
          %354 = dma.hbm_to_vmem [thread:$0]  %s3, 256, %s349, [#allocation13], 64, 64, 4
        $region16: #{tpu_custom_call.1} parent=11 // pred_fallthru
          _
        // Predicated region
        $region17: #{tpu_custom_call.1} parent=11 // pred_check
          %p355 = pneg %p173
        $region18: #{tpu_custom_call.1} parent=11 // pred_check_branch
          %357 = sbr.rel (%p355) target = $region20
        $region19: #{tpu_custom_call.1} parent=11 // pred_region
          _
        $region20: #{tpu_custom_call.1} parent=11 // pred_fallthru
          _
        // Predicated region
        $region21: #{tpu_custom_call.1} parent=11 // pred_check
          %p358 = pneg %p194
        $region22: #{tpu_custom_call.1} parent=11 // pred_check_branch
          %360 = sbr.rel (%p358) target = $region24
        $region23: #{tpu_custom_call.1} parent=11 // pred_region
          _
        $region24: #{tpu_custom_call.1} parent=11 // pred_fallthru
          _
        // Predicated region
        $region25: #{tpu_custom_call.1} parent=11 // pred_check
          %p361 = pneg %p215
        $region26: #{tpu_custom_call.1} parent=11 // pred_check_branch
          %363 = sbr.rel (%p361) target = $region28
        $region27: #{tpu_custom_call.1} parent=11 // pred_region
          _
        $region28: #{tpu_custom_call.1} parent=11 // pred_fallthru
          _
        // Predicated region
        $region29: #{tpu_custom_call.1} parent=11 // pred_check
          %p364 = pneg %p236
        $region30: #{tpu_custom_call.1} parent=11 // pred_check_branch
          %366 = sbr.rel (%p364) target = $region32
        $region31: #{tpu_custom_call.1} parent=11 // pred_region
          %s368 = ssub.s32 256, 256
          %369 = vsyncadd [#allocation13], %s368
          %s370 = sshll.u32 [#allocation14], 4
          %s371 = int_to_ptr.vmem [resolvable:$true] %s370
          %376 = dma.hbm_to_vmem [thread:$0]  %s7, 256, %s371, [#allocation13], 64, 64, 4
        $region32: #{tpu_custom_call.1} parent=11 // pred_fallthru
          _
        // Predicated region
        $region33: #{tpu_custom_call.1} parent=11 // pred_check
          %p377 = pneg %p257
        $region34: #{tpu_custom_call.1} parent=11 // pred_check_branch
          %379 = sbr.rel (%p377) target = $region36
        $region35: #{tpu_custom_call.1} parent=11 // pred_region
          %s381 = ssub.s32 16, 16
          %382 = vsyncadd [#allocation16], %s381
          %s384 = sshll.u32 [#allocation15], 4
          %s385 = int_to_ptr.vmem [resolvable:$true] %s384
          %387 = dma.hbm_to_vmem [thread:$0]  %s8, 16, %s385, [#allocation16]
        $region36: #{tpu_custom_call.1} parent=11 // pred_fallthru
          _
        // Predicated region
        $region37: #{tpu_custom_call.1} parent=11 // pred_check
          %p388 = pneg %p278
        $region38: #{tpu_custom_call.1} parent=11 // pred_check_branch
          %390 = sbr.rel (%p388) target = $region40
        $region39: #{tpu_custom_call.1} parent=11 // pred_region
          _
        $region40: #{tpu_custom_call.1} parent=11 // pred_fallthru
          _
        // Predicated region
        $region41: #{tpu_custom_call.1} parent=11 // pred_check
          %p391 = pneg %p299
        $region42: #{tpu_custom_call.1} parent=11 // pred_check_branch
          %393 = sbr.rel (%p391) target = $region44
        $region43: #{tpu_custom_call.1} parent=11 // pred_region
          _
        $region44: #{tpu_custom_call.1} parent=11 // pred_fallthru
          _
      $region12: #{tpu_custom_call.1} parent=5 // pred_fallthru
        _
      %p394 = scmp.lt.s32.totalorder %s28, 2
      // Predicated region
      $region45: #{tpu_custom_call.1} parent=5 // pred_check
        %p395 = pneg %p394
      $region46: #{tpu_custom_call.1} parent=5 // pred_check_branch
        %397 = sbr.rel (%p395) target = $region48
      $region47: #{tpu_custom_call.1} parent=5 // pred_region
        // Predicated region
        $region49: #{tpu_custom_call.1} parent=47 // pred_check
          %p398 = pneg %p69
        $region50: #{tpu_custom_call.1} parent=47 // pred_check_branch
          %400 = sbr.rel (%p398) target = $region52
        $region51: #{tpu_custom_call.1} parent=47 // pred_region
          %s401 = sand.u32 %s59, 1
          %s402 = scalar_lea.sflag [#allocation7], %s401
          %s403 = sand.u32 %s59, 1
          %s404 = smul.addr %s403, 8
          %s405 = scalar_lea.vmem [#allocation6], %s404
          %s407 = ssub.s32 128, 128
          %408 = vsyncadd %s402, %s407
          %s409 = sadd.s32 %s36, %s35
          %s410 = smul.addr %s409, 128
          %s411 = scalar_lea.hbm %s0, %s410
          %s413 = sshll.u32 %s405, 4
          %s414 = int_to_ptr.vmem [resolvable:$true] %s413
          %416 = dma.hbm_to_vmem [thread:$0]  %s411, 128, %s414, %s402
        $region52: #{tpu_custom_call.1} parent=47 // pred_fallthru
          _
        // Predicated region
        $region53: #{tpu_custom_call.1} parent=47 // pred_check
          %p417 = pneg %p97
        $region54: #{tpu_custom_call.1} parent=47 // pred_check_branch
          %419 = sbr.rel (%p417) target = $region56
        $region55: #{tpu_custom_call.1} parent=47 // pred_region
          %s420 = sand.u32 %s28, 1
          %s421 = scalar_lea.sflag [#allocation10], %s420
          %s422 = sand.u32 %s87, 1
          %s423 = smul.addr %s422, 8
          %s424 = scalar_lea.vmem [#allocation9], %s423
          %s426 = ssub.s32 128, 128
          %427 = vsyncadd %s421, %s426
          %s428 = sadd.s32 %s37, %s35
          %s429 = smul.addr %s428, 128
          %s430 = scalar_lea.hbm %s1, %s429
          %s432 = sshll.u32 %s424, 4
          %s433 = int_to_ptr.vmem [resolvable:$true] %s432
          %435 = dma.hbm_to_vmem [thread:$0]  %s430, 128, %s433, %s421
        $region56: #{tpu_custom_call.1} parent=47 // pred_fallthru
          _
        // Predicated region
        $region57: #{tpu_custom_call.1} parent=47 // pred_check
          %p436 = pneg %p125
        $region58: #{tpu_custom_call.1} parent=47 // pred_check_branch
          %438 = sbr.rel (%p436) target = $region60
        $region59: #{tpu_custom_call.1} parent=47 // pred_region
          %s439 = sand.u32 %s28, 1
          %s440 = scalar_lea.sflag [#allocation10], %s439
          %s441 = sand.u32 %s115, 1
          %s442 = smul.addr %s441, 8
          %s443 = scalar_lea.vmem [#allocation11], %s442
          %s445 = ssub.s32 128, 128
          %446 = vsyncadd %s440, %s445
          %s447 = sadd.s32 %s37, %s35
          %s448 = smul.addr %s447, 128
          %s449 = scalar_lea.hbm %s2, %s448
          %s451 = sshll.u32 %s443, 4
          %s452 = int_to_ptr.vmem [resolvable:$true] %s451
          %454 = dma.hbm_to_vmem [thread:$0]  %s449, 128, %s452, %s440
        $region60: #{tpu_custom_call.1} parent=47 // pred_fallthru
          _
      $region48: #{tpu_custom_call.1} parent=5 // pred_fallthru
        _
      %p455 = scmp.le.s32.totalorder 1, %s28
      %p456 = scmp.lt.s32.totalorder %s28, 3
      %p457 = pnand %p455, %p456
      %p458 = pneg %p457
      // Predicated region
      $region61: #{tpu_custom_call.1} parent=5 // pred_check
        _
      $region62: #{tpu_custom_call.1} parent=5 // pred_check_branch
        %460 = sbr.rel (%p457) target = $region64
      $region63: #{tpu_custom_call.1} parent=5 // pred_region
        %s461 = ssub.s32 %s28, 1
        %s462 = sand.u32 %s62, 1
        %s463 = scalar_lea.sflag [#allocation7], %s462
        %s464 = sand.u32 %s62, 1
        %s465 = smul.addr %s464, 8
        %s466 = scalar_lea.vmem [#allocation6], %s465
        // Predicated region
        $region65: #{tpu_custom_call.1} parent=63 // pred_check
          %p467 = pneg %p75
        $region66: #{tpu_custom_call.1} parent=63 // pred_check_branch
          %469 = sbr.rel (%p467) target = $region68
        $region67: #{tpu_custom_call.1} parent=63 // pred_region
          %470 = dma.done %s463, 128
        $region68: #{tpu_custom_call.1} parent=63 // pred_fallthru
          _
        %s471 = sand.u32 %s33, 1
        %s472 = scalar_lea.sflag [#allocation10], %s471
        %s473 = sand.u32 %s90, 1
        %s474 = smul.addr %s473, 8
        %s475 = scalar_lea.vmem [#allocation9], %s474
        // Predicated region
        $region69: #{tpu_custom_call.1} parent=63 // pred_check
          %p476 = pneg %p103
        $region70: #{tpu_custom_call.1} parent=63 // pred_check_branch
          %478 = sbr.rel (%p476) target = $region72
        $region71: #{tpu_custom_call.1} parent=63 // pred_region
          %479 = dma.done %s472, 128
        $region72: #{tpu_custom_call.1} parent=63 // pred_fallthru
          _
        %s480 = sand.u32 %s33, 1
        %s481 = scalar_lea.sflag [#allocation10], %s480
        %s482 = sand.u32 %s118, 1
        %s483 = smul.addr %s482, 8
        %s484 = scalar_lea.vmem [#allocation11], %s483
        // Predicated region
        $region73: #{tpu_custom_call.1} parent=63 // pred_check
          %p485 = pneg %p131
        $region74: #{tpu_custom_call.1} parent=63 // pred_check_branch
          %487 = sbr.rel (%p485) target = $region76
        $region75: #{tpu_custom_call.1} parent=63 // pred_region
          %488 = dma.done %s481, 128
        $region76: #{tpu_custom_call.1} parent=63 // pred_fallthru
          _
        // Predicated region
        $region77: #{tpu_custom_call.1} parent=63 // pred_check
          %p489 = pneg %p152
        $region78: #{tpu_custom_call.1} parent=63 // pred_check_branch
          %491 = sbr.rel (%p489) target = $region80
        $region79: #{tpu_custom_call.1} parent=63 // pred_region
          %492 = dma.done [#allocation13], 256
        $region80: #{tpu_custom_call.1} parent=63 // pred_fallthru
          _
        // Predicated region
        $region81: #{tpu_custom_call.1} parent=63 // pred_check
          %p493 = pneg %p236
        $region82: #{tpu_custom_call.1} parent=63 // pred_check_branch
          %495 = sbr.rel (%p493) target = $region84
        $region83: #{tpu_custom_call.1} parent=63 // pred_region
          %496 = dma.done [#allocation13], 256
        $region84: #{tpu_custom_call.1} parent=63 // pred_fallthru
          _
        // Predicated region
        $region85: #{tpu_custom_call.1} parent=63 // pred_check
          %p497 = pneg %p257
        $region86: #{tpu_custom_call.1} parent=63 // pred_check_branch
          %499 = sbr.rel (%p497) target = $region88
        $region87: #{tpu_custom_call.1} parent=63 // pred_region
          %500 = dma.done [#allocation16], 16
        $region88: #{tpu_custom_call.1} parent=63 // pred_fallthru
          _
        %s501 = sand.u32 %s62, 1
        %s502 = scalar_lea.sflag [#allocation7], %s501
        %s503 = sand.u32 %s62, 1
        %s504 = smul.addr %s503, 8
        %s505 = scalar_lea.vmem [#allocation6], %s504
        %p506 = pneg %p75
        %p507 = pneg %p72
        %s508 = sand.u32 %s33, 1
        %s509 = scalar_lea.sflag [#allocation10], %s508
        %s510 = sand.u32 %s90, 1
        %s511 = smul.addr %s510, 8
        %s512 = scalar_lea.vmem [#allocation9], %s511
        %p513 = pneg %p103
        %p514 = pneg %p100
        %s515 = sand.u32 %s33, 1
        %s516 = scalar_lea.sflag [#allocation10], %s515
        %s517 = sand.u32 %s118, 1
        %s518 = smul.addr %s517, 8
        %s519 = scalar_lea.vmem [#allocation11], %s518
        %p520 = pneg %p131
        %p521 = pneg %p128
        %p522 = pneg %p152
        %p523 = pneg %p149
        %p524 = pneg %p173
        %p525 = pneg %p170
        %p526 = pneg %p194
        %p527 = pneg %p191
        %p528 = pneg %p215
        %p529 = pneg %p212
        %p530 = pneg %p236
        %p531 = pneg %p233
        %p532 = pneg %p257
        %p533 = pneg %p254
        %p534 = pneg %p278
        %p535 = pneg %p275
        %p536 = pneg %p299
        %p537 = pneg %p296
        %p538 = pneg %p327
        %p539 = pneg %p324
        %s540 = sand.u32 %s314, 1
        %s541 = scalar_lea.sflag [#allocation8], %s540
        %s542 = sand.u32 %s314, 1
        %s543 = smul.addr %s542, 8
        %s544 = scalar_lea.vmem [#allocation17], %s543
        %p546 = scmp.eq.s32.totalorder %s40, 0
        // Predicated region
        $region89: #{tpu_custom_call.1} parent=63 // pred_check
          %p547 = pneg %p546
        $region90: #{tpu_custom_call.1} parent=63 // pred_check_branch
          %549 = sbr.rel (%p547) target = $region92
        $region91: #{tpu_custom_call.1} parent=63 // pred_region
          %v550 = vld [vmem:[%s466] sm:$0xff]
          %v551 = vpack.c.bf16 %v550, %v550
          %v552 = vld [vmem:[#allocation12] sm:$0xf]
          %v553 = vld [vmem:[#allocation12 + $0x4] sm:$0xf]
          %v554 = vld [vmem:[#allocation12 + $0x8] sm:$0xf]
          %v555 = vld [vmem:[#allocation12 + $0xc] sm:$0xf]
          %v556 = vld [vmem:[%s4] sm:$0x1]
          %v558 = vlaneseq
          %v559 = vshrl.u32 %v558, 7
          %v560 = vsub.s32 0, %v559
          %v561 = vrot.slane %v556, %v560
          %v567 = vunpack.c.l.b16 %v552
          %v568 = vunpack.c.l.b16 %v553
          %v569 = vunpack.c.l.b16 %v554
          %v570 = vunpack.c.l.b16 %v555
          %v571 = vpack.c.b16 %v568, %v567
          %v572 = vpack.c.b16 %v570, %v569
          %vm575 = vcmask 261120
          %v577 = vsel %vm575, %v551, 0
          %579 = vmatprep.subr.bf16.mxu0 0
          %580 = vmatpush1.bf16.msra.mxu0 %v571
          %581 = vmatprep.subr.bf16.mxu0 0
          %582 = vmatpush1.bf16.msra.mxu0 %v572
          %583 = vmatprep.subr.bf16.mxu0 0
          %584 = vmatpush1.bf16.msra.mxu0 0
          %585 = vmatprep.subr.bf16.mxu0 0
          %586 = vmatpush1.bf16.msra.mxu0 0
          %587 = vmatprep.subr.bf16.mxu0 0
          %588 = vmatpush1.bf16.msra.mxu0 0
          %589 = vmatprep.subr.bf16.mxu0 0
          %590 = vmatpush1.bf16.msra.mxu0 0
          %591 = vmatprep.subr.bf16.mxu0 0
          %592 = vmatpush1.bf16.msra.mxu0 0
          %593 = vmatprep.subr.bf16.mxu0 0
          %594 = vmatpush1.bf16.msra.mxu0 0
          %595 = vmatprep.subr.bf16.mxu0 0
          %596 = vmatpush1.bf16.msra.mxu0 0
          %597 = vmatprep.subr.bf16.mxu0 0
          %598 = vmatpush1.bf16.msra.mxu0 0
          %599 = vmatprep.subr.bf16.mxu0 0
          %600 = vmatpush1.bf16.msra.mxu0 0
          %601 = vmatprep.subr.bf16.mxu0 0
          %602 = vmatpush1.bf16.msra.mxu0 0
          %603 = vmatprep.subr.bf16.mxu0 0
          %604 = vmatpush1.bf16.msra.mxu0 0
          %605 = vmatprep.subr.bf16.mxu0 0
          %606 = vmatpush1.bf16.msra.mxu0 0
          %607 = vmatprep.subr.bf16.mxu0 0
          %608 = vmatpush1.bf16.msra.mxu0 0
          %609 = vmatprep.subr.bf16.mxu0 0
          %610 = vmatpush1.bf16.msra.mxu0 0
          %611 = vmatprep.mubr.bf16.mxu0 0
          %612 = vmatmul.mubr.bf16.gmra.mrb[0].mxu0 %v577
          %v613 = vpop.f32.mrb[0].mxu0
          %v614 = vadd.f32 %v561, %v613
          %v615 = vpop.f32.mrb[0].mxu0
          %v616 = vpop.f32.mrb[0].mxu0
          %v617 = vpop.f32.mrb[0].mxu0
          %618 = vdwg.mxu0
          %v619 = vmul.f32 %v614, 0.35355338
          %620 = vst.msk [vmem:[#allocation2] sm:$0xff] %vm575, %v619
          %vm621 = vcmask 31744
          %622 = vst.msk [vmem:[#allocation3] sm:$0xff] %vm621, -inf
          %623 = vst.msk [vmem:[#allocation4] sm:$0xff] %vm621, 0.0
          %624 = vst.msk [vmem:[#allocation5] sm:$0xff] %vm575, 0.0
        $region92: #{tpu_custom_call.1} parent=63 // pred_fallthru
          _
        %v625 = vld [vmem:[%s475] sm:$0xff]
        %v626 = vpack.c.bf16 %v625, %v625
        %v627 = vld [vmem:[%s484] sm:$0xff]
        %v628 = vpack.c.bf16 %v627, %v627
        %v629 = vld [vmem:[%s5] sm:$0xf]
        %v630 = vld [vmem:[%s5 + $0x4] sm:$0xf]
        %v631 = vld [vmem:[%s5 + $0x8] sm:$0xf]
        %v632 = vld [vmem:[%s5 + $0xc] sm:$0xf]
        %v633 = vld [vmem:[%s6] sm:$0x1]
        %v635 = vlaneseq
        %v636 = vshrl.u32 %v635, 7
        %v637 = vsub.s32 0, %v636
        %v638 = vrot.slane %v633, %v637
        %v644 = vunpack.c.l.b16 %v629
        %v645 = vunpack.c.l.b16 %v630
        %v646 = vunpack.c.l.b16 %v631
        %v647 = vunpack.c.l.b16 %v632
        %v648 = vpack.c.b16 %v645, %v644
        %v649 = vpack.c.b16 %v647, %v646
        %vm652 = vcmask 261120
        %v654 = vsel %vm652, %v626, 0
        %656 = vmatprep.subr.bf16.mxu0 0
        %657 = vmatpush1.bf16.msra.mxu0 %v648
        %658 = vmatprep.subr.bf16.mxu0 0
        %659 = vmatpush1.bf16.msra.mxu0 %v649
        %660 = vmatprep.subr.bf16.mxu0 0
        %661 = vmatpush1.bf16.msra.mxu0 0
        %662 = vmatprep.subr.bf16.mxu0 0
        %663 = vmatpush1.bf16.msra.mxu0 0
        %664 = vmatprep.subr.bf16.mxu0 0
        %665 = vmatpush1.bf16.msra.mxu0 0
        %666 = vmatprep.subr.bf16.mxu0 0
        %667 = vmatpush1.bf16.msra.mxu0 0
        %668 = vmatprep.subr.bf16.mxu0 0
        %669 = vmatpush1.bf16.msra.mxu0 0
        %670 = vmatprep.subr.bf16.mxu0 0
        %671 = vmatpush1.bf16.msra.mxu0 0
        %672 = vmatprep.subr.bf16.mxu0 0
        %673 = vmatpush1.bf16.msra.mxu0 0
        %674 = vmatprep.subr.bf16.mxu0 0
        %675 = vmatpush1.bf16.msra.mxu0 0
        %676 = vmatprep.subr.bf16.mxu0 0
        %677 = vmatpush1.bf16.msra.mxu0 0
        %678 = vmatprep.subr.bf16.mxu0 0
        %679 = vmatpush1.bf16.msra.mxu0 0
        %680 = vmatprep.subr.bf16.mxu0 0
        %681 = vmatpush1.bf16.msra.mxu0 0
        %682 = vmatprep.subr.bf16.mxu0 0
        %683 = vmatpush1.bf16.msra.mxu0 0
        %684 = vmatprep.subr.bf16.mxu0 0
        %685 = vmatpush1.bf16.msra.mxu0 0
        %686 = vmatprep.subr.bf16.mxu0 0
        %687 = vmatpush1.bf16.msra.mxu0 0
        %688 = vmatprep.mubr.bf16.mxu0 0
        %689 = vmatmul.mubr.bf16.gmra.mrb[0].mxu0 %v654
        %v690 = vpop.f32.mrb[0].mxu0
        %v691 = vadd.f32 %v638, %v690
        %v692 = vpop.f32.mrb[0].mxu0
        %v693 = vpop.f32.mrb[0].mxu0
        %v694 = vpop.f32.mrb[0].mxu0
        %695 = vdwg.mxu0
        %v696 = vpack.c.bf16 %v691, %v691
        %v697 = vld [vmem:[#allocation14] sm:$0xf]
        %v698 = vld [vmem:[#allocation14 + $0x4] sm:$0xf]
        %v699 = vld [vmem:[#allocation14 + $0x8] sm:$0xf]
        %v700 = vld [vmem:[#allocation14 + $0xc] sm:$0xf]
        %v701 = vld [vmem:[#allocation15] sm:$0x1]
        %v703 = vlaneseq
        %v704 = vshrl.u32 %v703, 7
        %v705 = vsub.s32 0, %v704
        %v706 = vrot.slane %v701, %v705
        %v712 = vunpack.c.l.b16 %v697
        %v713 = vunpack.c.l.b16 %v698
        %v714 = vunpack.c.l.b16 %v699
        %v715 = vunpack.c.l.b16 %v700
        %v716 = vpack.c.b16 %v713, %v712
        %v717 = vpack.c.b16 %v715, %v714
        %v721 = vsel %vm652, %v628, 0
        %723 = vmatprep.subr.bf16.mxu0 0
        %724 = vmatpush1.bf16.msra.mxu0 %v716
        %725 = vmatprep.subr.bf16.mxu0 0
        %726 = vmatpush1.bf16.msra.mxu0 %v717
        %727 = vmatprep.subr.bf16.mxu0 0
        %728 = vmatpush1.bf16.msra.mxu0 0
        %729 = vmatprep.subr.bf16.mxu0 0
        %730 = vmatpush1.bf16.msra.mxu0 0
        %731 = vmatprep.subr.bf16.mxu0 0
        %732 = vmatpush1.bf16.msra.mxu0 0
        %733 = vmatprep.subr.bf16.mxu0 0
        %734 = vmatpush1.bf16.msra.mxu0 0
        %735 = vmatprep.subr.bf16.mxu0 0
        %736 = vmatpush1.bf16.msra.mxu0 0
        %737 = vmatprep.subr.bf16.mxu0 0
        %738 = vmatpush1.bf16.msra.mxu0 0
        %739 = vmatprep.subr.bf16.mxu0 0
        %740 = vmatpush1.bf16.msra.mxu0 0
        %741 = vmatprep.subr.bf16.mxu0 0
        %742 = vmatpush1.bf16.msra.mxu0 0
        %743 = vmatprep.subr.bf16.mxu0 0
        %744 = vmatpush1.bf16.msra.mxu0 0
        %745 = vmatprep.subr.bf16.mxu0 0
        %746 = vmatpush1.bf16.msra.mxu0 0
        %747 = vmatprep.subr.bf16.mxu0 0
        %748 = vmatpush1.bf16.msra.mxu0 0
        %749 = vmatprep.subr.bf16.mxu0 0
        %750 = vmatpush1.bf16.msra.mxu0 0
        %751 = vmatprep.subr.bf16.mxu0 0
        %752 = vmatpush1.bf16.msra.mxu0 0
        %753 = vmatprep.subr.bf16.mxu0 0
        %754 = vmatpush1.bf16.msra.mxu0 0
        %755 = vmatprep.mubr.bf16.mxu0 0
        %756 = vmatmul.mubr.bf16.gmra.mrb[0].mxu0 %v721
        %v757 = vpop.f32.mrb[0].mxu0
        %v758 = vadd.f32 %v706, %v757
        %v759 = vpop.f32.mrb[0].mxu0
        %v760 = vpop.f32.mrb[0].mxu0
        %v761 = vpop.f32.mrb[0].mxu0
        %762 = vdwg.mxu0
        %v763 = vpack.c.bf16 %v758, %v758
        %v764 = vld [vmem:[#allocation2] sm:$0xff]
        %v765 = vpack.c.bf16 %v764, %v764
        %vm766 = vcmask 64512
        %v768 = vsel %vm766, %v765, 0
        %v771 = vsel %vm766, %v696, 0
        %773 = vmatprep.subr.bf16.mxu0 0
        %774 = vmatpush1.bf16.xpose.msra.mxu0 %v771
        %775 = vmatprep.subr.bf16.mxu0 0
        %776 = vmatpush1.bf16.xpose.msra.mxu0 0
        %777 = vmatprep.subr.bf16.mxu0 0
        %778 = vmatpush1.bf16.xpose.msra.mxu0 0
        %779 = vmatprep.subr.bf16.mxu0 0
        %780 = vmatpush1.bf16.xpose.msra.mxu0 0
        %781 = vmatprep.subr.bf16.mxu0 0
        %782 = vmatpush1.bf16.xpose.msra.mxu0 0
        %783 = vmatprep.subr.bf16.mxu0 0
        %784 = vmatpush1.bf16.xpose.msra.mxu0 0
        %785 = vmatprep.subr.bf16.mxu0 0
        %786 = vmatpush1.bf16.xpose.msra.mxu0 0
        %787 = vmatprep.subr.bf16.mxu0 0
        %788 = vmatpush1.bf16.xpose.msra.mxu0 0
        %789 = vmatprep.subr.bf16.mxu0 0
        %790 = vmatpush1.bf16.xpose.msra.mxu0 0
        %791 = vmatprep.subr.bf16.mxu0 0
        %792 = vmatpush1.bf16.xpose.msra.mxu0 0
        %793 = vmatprep.subr.bf16.mxu0 0
        %794 = vmatpush1.bf16.xpose.msra.mxu0 0
        %795 = vmatprep.subr.bf16.mxu0 0
        %796 = vmatpush1.bf16.xpose.msra.mxu0 0
        %797 = vmatprep.subr.bf16.mxu0 0
        %798 = vmatpush1.bf16.xpose.msra.mxu0 0
        %799 = vmatprep.subr.bf16.mxu0 0
        %800 = vmatpush1.bf16.xpose.msra.mxu0 0
        %801 = vmatprep.subr.bf16.mxu0 0
        %802 = vmatpush1.bf16.xpose.msra.mxu0 0
        %803 = vmatprep.subr.bf16.mxu0 0
        %804 = vmatpush1.bf16.xpose.msra.mxu0 0
        %805 = vmatprep.mubr.bf16.mxu0 0
        %806 = vmatmul.mubr.bf16.gmra.mrb[0].mxu0 %v768
        %v807 = vpop.f32.mrb[0].mxu0
        %v808 = vadd.f32 0.0, %v807
        %v809 = vpop.f32.mrb[0].mxu0
        %v810 = vpop.f32.mrb[0].mxu0
        %v811 = vpop.f32.mrb[0].mxu0
        %812 = vdwg.mxu0
        %v813 = vld [vmem:[#allocation3] sm:$0xff]
        %v814 = vsel %vm766, %v808, -inf
        %815 = vmax.xlane.f32.xlu0 %v814
        %v816 = vpop.xlane.xlu0 %815
        %v817 = vmax.f32 %v813, %v816
        %v818 = vsub.f32 %v813, %v817
        %v819 = vmul.f32 %v818, 1.442695
        %v820 = vpow.pop %v819
        %822 = vset.pattern.permute.xlu0 0
        %823 = vperm.xlu0 %822, %v817
        %v824 = vpop.permute.xlu0 %823
        %v826 = vsub.f32 %v808, %v824
        %v827 = vmul.f32 %v826, 1.442695
        %v828 = vpow.pop %v827
        %v829 = vld [vmem:[#allocation4] sm:$0xff]
        %v830 = vmul.f32 %v820, %v829
        %v831 = vsel %vm766, %v828, 0.0
        %832 = vadd.xlane.f32.xlu0 %v831
        %v833 = vpop.xlane.xlu0 %832
        %v834 = vadd.f32 %v830, %v833
        %vm835 = vcmask 7168
        %836 = vst.msk [vmem:[#allocation4] sm:$0xff] %vm835, %v834
        %v837 = vld [vmem:[#allocation5] sm:$0xff]
        %839 = vset.pattern.permute.xlu0 0
        %840 = vperm.xlu0 %839, %v820
        %v841 = vpop.permute.xlu0 %840
        %v843 = vmul.f32 %v841, %v837
        %v844 = vpack.c.bf16 %v828, %v828
        %v846 = vsel %vm766, %v844, 0
        %vm848 = vcmask 1043456
        %v850 = vsel %vm848, %v763, 0
        %852 = vmatprep.subr.bf16.mxu0 0
        %853 = vmatpush1.bf16.msra.mxu0 %v850
        %854 = vmatprep.subr.bf16.mxu0 0
        %855 = vmatpush1.bf16.msra.mxu0 0
        %856 = vmatprep.subr.bf16.mxu0 0
        %857 = vmatpush1.bf16.msra.mxu0 0
        %858 = vmatprep.subr.bf16.mxu0 0
        %859 = vmatpush1.bf16.msra.mxu0 0
        %860 = vmatprep.subr.bf16.mxu0 0
        %861 = vmatpush1.bf16.msra.mxu0 0
        %862 = vmatprep.subr.bf16.mxu0 0
        %863 = vmatpush1.bf16.msra.mxu0 0
        %864 = vmatprep.subr.bf16.mxu0 0
        %865 = vmatpush1.bf16.msra.mxu0 0
        %866 = vmatprep.subr.bf16.mxu0 0
        %867 = vmatpush1.bf16.msra.mxu0 0
        %868 = vmatprep.subr.bf16.mxu0 0
        %869 = vmatpush1.bf16.msra.mxu0 0
        %870 = vmatprep.subr.bf16.mxu0 0
        %871 = vmatpush1.bf16.msra.mxu0 0
        %872 = vmatprep.subr.bf16.mxu0 0
        %873 = vmatpush1.bf16.msra.mxu0 0
        %874 = vmatprep.subr.bf16.mxu0 0
        %875 = vmatpush1.bf16.msra.mxu0 0
        %876 = vmatprep.subr.bf16.mxu0 0
        %877 = vmatpush1.bf16.msra.mxu0 0
        %878 = vmatprep.subr.bf16.mxu0 0
        %879 = vmatpush1.bf16.msra.mxu0 0
        %880 = vmatprep.subr.bf16.mxu0 0
        %881 = vmatpush1.bf16.msra.mxu0 0
        %882 = vmatprep.subr.bf16.mxu0 0
        %883 = vmatpush1.bf16.msra.mxu0 0
        %884 = vmatprep.mubr.bf16.mxu0 0
        %885 = vmatmul.mubr.bf16.gmra.mrb[0].mxu0 %v846
        %v886 = vpop.f32.mrb[0].mxu0
        %v887 = vadd.f32 0.0, %v886
        %v888 = vpop.f32.mrb[0].mxu0
        %v889 = vpop.f32.mrb[0].mxu0
        %v890 = vpop.f32.mrb[0].mxu0
        %891 = vdwg.mxu0
        %v892 = vadd.f32 %v843, %v887
        %893 = vst.msk [vmem:[#allocation5] sm:$0xff] %vm766, %v892
        %894 = vst.msk [vmem:[#allocation3] sm:$0xff] %vm835, %v817
        %v895 = vld [vmem:[#allocation2] sm:$0xff]
        %v896 = vpack.c.bf16 %v895, %v895
        %898 = vrot.lane.b32.xlu0 %v896, 120
        %v899 = vpop.permute.xlu0 %898
        %901 = vrot.lane.b32.xlu0 %v696, 120
        %v902 = vpop.permute.xlu0 %901
        %v904 = vsel %vm766, %v899, 0
        %v907 = vsel %vm766, %v902, 0
        %909 = vmatprep.subr.bf16.mxu0 0
        %910 = vmatpush1.bf16.xpose.msra.mxu0 %v907
        %911 = vmatprep.subr.bf16.mxu0 0
        %912 = vmatpush1.bf16.xpose.msra.mxu0 0
        %913 = vmatprep.subr.bf16.mxu0 0
        %914 = vmatpush1.bf16.xpose.msra.mxu0 0
        %915 = vmatprep.subr.bf16.mxu0 0
        %916 = vmatpush1.bf16.xpose.msra.mxu0 0
        %917 = vmatprep.subr.bf16.mxu0 0
        %918 = vmatpush1.bf16.xpose.msra.mxu0 0
        %919 = vmatprep.subr.bf16.mxu0 0
        %920 = vmatpush1.bf16.xpose.msra.mxu0 0
        %921 = vmatprep.subr.bf16.mxu0 0
        %922 = vmatpush1.bf16.xpose.msra.mxu0 0
        %923 = vmatprep.subr.bf16.mxu0 0
        %924 = vmatpush1.bf16.xpose.msra.mxu0 0
        %925 = vmatprep.subr.bf16.mxu0 0
        %926 = vmatpush1.bf16.xpose.msra.mxu0 0
        %927 = vmatprep.subr.bf16.mxu0 0
        %928 = vmatpush1.bf16.xpose.msra.mxu0 0
        %929 = vmatprep.subr.bf16.mxu0 0
        %930 = vmatpush1.bf16.xpose.msra.mxu0 0
        %931 = vmatprep.subr.bf16.mxu0 0
        %932 = vmatpush1.bf16.xpose.msra.mxu0 0
        %933 = vmatprep.subr.bf16.mxu0 0
        %934 = vmatpush1.bf16.xpose.msra.mxu0 0
        %935 = vmatprep.subr.bf16.mxu0 0
        %936 = vmatpush1.bf16.xpose.msra.mxu0 0
        %937 = vmatprep.subr.bf16.mxu0 0
        %938 = vmatpush1.bf16.xpose.msra.mxu0 0
        %939 = vmatprep.subr.bf16.mxu0 0
        %940 = vmatpush1.bf16.xpose.msra.mxu0 0
        %941 = vmatprep.mubr.bf16.mxu0 0
        %942 = vmatmul.mubr.bf16.gmra.mrb[0].mxu0 %v904
        %v943 = vpop.f32.mrb[0].mxu0
        %v944 = vadd.f32 0.0, %v943
        %v945 = vpop.f32.mrb[0].mxu0
        %v946 = vpop.f32.mrb[0].mxu0
        %v947 = vpop.f32.mrb[0].mxu0
        %948 = vdwg.mxu0
        %v949 = vld [vmem:[#allocation3] sm:$0xff]
        %v950 = vsel %vm766, %v944, -inf
        %951 = vmax.xlane.f32.xlu0 %v950
        %v952 = vpop.xlane.xlu0 %951
        %v953 = vmax.f32 %v949, %v952
        %v954 = vsub.f32 %v949, %v953
        %v955 = vmul.f32 %v954, 1.442695
        %v956 = vpow.pop %v955
        %958 = vset.pattern.permute.xlu0 1
        %959 = vperm.xlu0 %958, %v953
        %v960 = vpop.permute.xlu0 %959
        %v962 = vsub.f32 %v944, %v960
        %v963 = vmul.f32 %v962, 1.442695
        %v964 = vpow.pop %v963
        %v965 = vld [vmem:[#allocation4] sm:$0xff]
        %v966 = vmul.f32 %v956, %v965
        %v967 = vsel %vm766, %v964, 0.0
        %968 = vadd.xlane.f32.xlu0 %v967
        %v969 = vpop.xlane.xlu0 %968
        %v970 = vadd.f32 %v966, %v969
        %vm971 = vcmask 15368
        %972 = vst.msk [vmem:[#allocation4] sm:$0xff] %vm971, %v970
        %v973 = vld [vmem:[#allocation5] sm:$0xff]
        %975 = vset.pattern.permute.xlu0 1
        %976 = vperm.xlu0 %975, %v956
        %v977 = vpop.permute.xlu0 %976
        %v979 = vmul.f32 %v977, %v973
        %v980 = vpack.c.bf16 %v964, %v964
        %982 = vrot.lane.b32.xlu0 %v763, 120
        %v983 = vpop.permute.xlu0 %982
        %v985 = vsel %vm766, %v980, 0
        %v988 = vsel %vm848, %v983, 0
        %990 = vmatprep.subr.bf16.mxu0 0
        %991 = vmatpush1.bf16.msra.mxu0 %v988
        %992 = vmatprep.subr.bf16.mxu0 0
        %993 = vmatpush1.bf16.msra.mxu0 0
        %994 = vmatprep.subr.bf16.mxu0 0
        %995 = vmatpush1.bf16.msra.mxu0 0
        %996 = vmatprep.subr.bf16.mxu0 0
        %997 = vmatpush1.bf16.msra.mxu0 0
        %998 = vmatprep.subr.bf16.mxu0 0
        %999 = vmatpush1.bf16.msra.mxu0 0
        %1000 = vmatprep.subr.bf16.mxu0 0
        %1001 = vmatpush1.bf16.msra.mxu0 0
        %1002 = vmatprep.subr.bf16.mxu0 0
        %1003 = vmatpush1.bf16.msra.mxu0 0
        %1004 = vmatprep.subr.bf16.mxu0 0
        %1005 = vmatpush1.bf16.msra.mxu0 0
        %1006 = vmatprep.subr.bf16.mxu0 0
        %1007 = vmatpush1.bf16.msra.mxu0 0
        %1008 = vmatprep.subr.bf16.mxu0 0
        %1009 = vmatpush1.bf16.msra.mxu0 0
        %1010 = vmatprep.subr.bf16.mxu0 0
        %1011 = vmatpush1.bf16.msra.mxu0 0
        %1012 = vmatprep.subr.bf16.mxu0 0
        %1013 = vmatpush1.bf16.msra.mxu0 0
        %1014 = vmatprep.subr.bf16.mxu0 0
        %1015 = vmatpush1.bf16.msra.mxu0 0
        %1016 = vmatprep.subr.bf16.mxu0 0
        %1017 = vmatpush1.bf16.msra.mxu0 0
        %1018 = vmatprep.subr.bf16.mxu0 0
        %1019 = vmatpush1.bf16.msra.mxu0 0
        %1020 = vmatprep.subr.bf16.mxu0 0
        %1021 = vmatpush1.bf16.msra.mxu0 0
        %1022 = vmatprep.mubr.bf16.mxu0 0
        %1023 = vmatmul.mubr.bf16.gmra.mrb[0].mxu0 %v985
        %v1024 = vpop.f32.mrb[0].mxu0
        %v1025 = vadd.f32 0.0, %v1024
        %v1026 = vpop.f32.mrb[0].mxu0
        %v1027 = vpop.f32.mrb[0].mxu0
        %v1028 = vpop.f32.mrb[0].mxu0
        %1029 = vdwg.mxu0
        %1031 = vrot.lane.b32.xlu0 %v1025, 8
        %v1032 = vpop.permute.xlu0 %1031
        %v1034 = vadd.f32 %v979, %v1032
        %vm1035 = vcmask 130112
        %1036 = vst.msk [vmem:[#allocation5] sm:$0xff] %vm1035, %v1034
        %1037 = vst.msk [vmem:[#allocation3] sm:$0xff] %vm971, %v953
        %v1038 = vld [vmem:[#allocation2] sm:$0xff]
        %v1039 = vpack.c.bf16 %v1038, %v1038
        %1041 = vrot.lane.b32.xlu0 %v1039, 112
        %v1042 = vpop.permute.xlu0 %1041
        %1043 = vrot.lane.b32.xlu0 %v696, 112
        %v1044 = vpop.permute.xlu0 %1043
        %v1046 = vsel %vm766, %v1042, 0
        %v1049 = vsel %vm766, %v1044, 0
        %1051 = vmatprep.subr.bf16.mxu0 0
        %1052 = vmatpush1.bf16.xpose.msra.mxu0 %v1049
        %1053 = vmatprep.subr.bf16.mxu0 0
        %1054 = vmatpush1.bf16.xpose.msra.mxu0 0
        %1055 = vmatprep.subr.bf16.mxu0 0
        %1056 = vmatpush1.bf16.xpose.msra.mxu0 0
        %1057 = vmatprep.subr.bf16.mxu0 0
        %1058 = vmatpush1.bf16.xpose.msra.mxu0 0
        %1059 = vmatprep.subr.bf16.mxu0 0
        %1060 = vmatpush1.bf16.xpose.msra.mxu0 0
        %1061 = vmatprep.subr.bf16.mxu0 0
        %1062 = vmatpush1.bf16.xpose.msra.mxu0 0
        %1063 = vmatprep.subr.bf16.mxu0 0
        %1064 = vmatpush1.bf16.xpose.msra.mxu0 0
        %1065 = vmatprep.subr.bf16.mxu0 0
        %1066 = vmatpush1.bf16.xpose.msra.mxu0 0
        %1067 = vmatprep.subr.bf16.mxu0 0
        %1068 = vmatpush1.bf16.xpose.msra.mxu0 0
        %1069 = vmatprep.subr.bf16.mxu0 0
        %1070 = vmatpush1.bf16.xpose.msra.mxu0 0
        %1071 = vmatprep.subr.bf16.mxu0 0
        %1072 = vmatpush1.bf16.xpose.msra.mxu0 0
        %1073 = vmatprep.subr.bf16.mxu0 0
        %1074 = vmatpush1.bf16.xpose.msra.mxu0 0
        %1075 = vmatprep.subr.bf16.mxu0 0
        %1076 = vmatpush1.bf16.xpose.msra.mxu0 0
        %1077 = vmatprep.subr.bf16.mxu0 0
        %1078 = vmatpush1.bf16.xpose.msra.mxu0 0
        %1079 = vmatprep.subr.bf16.mxu0 0
        %1080 = vmatpush1.bf16.xpose.msra.mxu0 0
        %1081 = vmatprep.subr.bf16.mxu0 0
        %1082 = vmatpush1.bf16.xpose.msra.mxu0 0
        %1083 = vmatprep.mubr.bf16.mxu0 0
        %1084 = vmatmul.mubr.bf16.gmra.mrb[0].mxu0 %v1046
        %v1085 = vpop.f32.mrb[0].mxu0
        %v1086 = vadd.f32 0.0, %v1085
        %v1087 = vpop.f32.mrb[0].mxu0
        %v1088 = vpop.f32.mrb[0].mxu0
        %v1089 = vpop.f32.mrb[0].mxu0
        %1090 = vdwg.mxu0
        %v1091 = vld [vmem:[#allocation3] sm:$0xff]
        %v1092 = vsel %vm766, %v1086, -inf
        %1093 = vmax.xlane.f32.xlu0 %v1092
        %v1094 = vpop.xlane.xlu0 %1093
        %v1095 = vmax.f32 %v1091, %v1094
        %v1096 = vsub.f32 %v1091, %v1095
        %v1097 = vmul.f32 %v1096, 1.442695
        %v1098 = vpow.pop %v1097
        %1100 = vset.pattern.permute.xlu0 2
        %1101 = vperm.xlu0 %1100, %v1095
        %v1102 = vpop.permute.xlu0 %1101
        %v1104 = vsub.f32 %v1086, %v1102
        %v1105 = vmul.f32 %v1104, 1.442695
        %v1106 = vpow.pop %v1105
        %v1107 = vld [vmem:[#allocation4] sm:$0xff]
        %v1108 = vmul.f32 %v1098, %v1107
        %v1109 = vsel %vm766, %v1106, 0.0
        %1110 = vadd.xlane.f32.xlu0 %v1109
        %v1111 = vpop.xlane.xlu0 %1110
        %v1112 = vadd.f32 %v1108, %v1111
        %vm1113 = vcmask 23568
        %1114 = vst.msk [vmem:[#allocation4] sm:$0xff] %vm1113, %v1112
        %v1115 = vld [vmem:[#allocation5] sm:$0xff]
        %1117 = vset.pattern.permute.xlu0 2
        %1118 = vperm.xlu0 %1117, %v1098
        %v1119 = vpop.permute.xlu0 %1118
        %v1121 = vmul.f32 %v1119, %v1115
        %v1122 = vpack.c.bf16 %v1106, %v1106
        %1123 = vrot.lane.b32.xlu0 %v763, 112
        %v1124 = vpop.permute.xlu0 %1123
        %v1126 = vsel %vm766, %v1122, 0
        %v1129 = vsel %vm848, %v1124, 0
        %1131 = vmatprep.subr.bf16.mxu0 0
        %1132 = vmatpush1.bf16.msra.mxu0 %v1129
        %1133 = vmatprep.subr.bf16.mxu0 0
        %1134 = vmatpush1.bf16.msra.mxu0 0
        %1135 = vmatprep.subr.bf16.mxu0 0
        %1136 = vmatpush1.bf16.msra.mxu0 0
        %1137 = vmatprep.subr.bf16.mxu0 0
        %1138 = vmatpush1.bf16.msra.mxu0 0
        %1139 = vmatprep.subr.bf16.mxu0 0
        %1140 = vmatpush1.bf16.msra.mxu0 0
        %1141 = vmatprep.subr.bf16.mxu0 0
        %1142 = vmatpush1.bf16.msra.mxu0 0
        %1143 = vmatprep.subr.bf16.mxu0 0
        %1144 = vmatpush1.bf16.msra.mxu0 0
        %1145 = vmatprep.subr.bf16.mxu0 0
        %1146 = vmatpush1.bf16.msra.mxu0 0
        %1147 = vmatprep.subr.bf16.mxu0 0
        %1148 = vmatpush1.bf16.msra.mxu0 0
        %1149 = vmatprep.subr.bf16.mxu0 0
        %1150 = vmatpush1.bf16.msra.mxu0 0
        %1151 = vmatprep.subr.bf16.mxu0 0
        %1152 = vmatpush1.bf16.msra.mxu0 0
        %1153 = vmatprep.subr.bf16.mxu0 0
        %1154 = vmatpush1.bf16.msra.mxu0 0
        %1155 = vmatprep.subr.bf16.mxu0 0
        %1156 = vmatpush1.bf16.msra.mxu0 0
        %1157 = vmatprep.subr.bf16.mxu0 0
        %1158 = vmatpush1.bf16.msra.mxu0 0
        %1159 = vmatprep.subr.bf16.mxu0 0
        %1160 = vmatpush1.bf16.msra.mxu0 0
        %1161 = vmatprep.subr.bf16.mxu0 0
        %1162 = vmatpush1.bf16.msra.mxu0 0
        %1163 = vmatprep.mubr.bf16.mxu0 0
        %1164 = vmatmul.mubr.bf16.gmra.mrb[0].mxu0 %v1126
        %v1165 = vpop.f32.mrb[0].mxu0
        %v1166 = vadd.f32 0.0, %v1165
        %v1167 = vpop.f32.mrb[0].mxu0
        %v1168 = vpop.f32.mrb[0].mxu0
        %v1169 = vpop.f32.mrb[0].mxu0
        %1170 = vdwg.mxu0
        %1172 = vrot.lane.b32.xlu0 %v1166, 16
        %v1173 = vpop.permute.xlu0 %1172
        %v1175 = vadd.f32 %v1121, %v1173
        %vm1176 = vcmask 195712
        %1177 = vst.msk [vmem:[#allocation5] sm:$0xff] %vm1176, %v1175
        %1178 = vst.msk [vmem:[#allocation3] sm:$0xff] %vm1113, %v1095
        %v1179 = vld [vmem:[#allocation2] sm:$0xff]
        %v1180 = vpack.c.bf16 %v1179, %v1179
        %1182 = vrot.lane.b32.xlu0 %v1180, 104
        %v1183 = vpop.permute.xlu0 %1182
        %1184 = vrot.lane.b32.xlu0 %v696, 104
        %v1185 = vpop.permute.xlu0 %1184
        %v1187 = vsel %vm766, %v1183, 0
        %v1190 = vsel %vm766, %v1185, 0
        %1192 = vmatprep.subr.bf16.mxu0 0
        %1193 = vmatpush1.bf16.xpose.msra.mxu0 %v1190
        %1194 = vmatprep.subr.bf16.mxu0 0
        %1195 = vmatpush1.bf16.xpose.msra.mxu0 0
        %1196 = vmatprep.subr.bf16.mxu0 0
        %1197 = vmatpush1.bf16.xpose.msra.mxu0 0
        %1198 = vmatprep.subr.bf16.mxu0 0
        %1199 = vmatpush1.bf16.xpose.msra.mxu0 0
        %1200 = vmatprep.subr.bf16.mxu0 0
        %1201 = vmatpush1.bf16.xpose.msra.mxu0 0
        %1202 = vmatprep.subr.bf16.mxu0 0
        %1203 = vmatpush1.bf16.xpose.msra.mxu0 0
        %1204 = vmatprep.subr.bf16.mxu0 0
        %1205 = vmatpush1.bf16.xpose.msra.mxu0 0
        %1206 = vmatprep.subr.bf16.mxu0 0
        %1207 = vmatpush1.bf16.xpose.msra.mxu0 0
        %1208 = vmatprep.subr.bf16.mxu0 0
        %1209 = vmatpush1.bf16.xpose.msra.mxu0 0
        %1210 = vmatprep.subr.bf16.mxu0 0
        %1211 = vmatpush1.bf16.xpose.msra.mxu0 0
        %1212 = vmatprep.subr.bf16.mxu0 0
        %1213 = vmatpush1.bf16.xpose.msra.mxu0 0
        %1214 = vmatprep.subr.bf16.mxu0 0
        %1215 = vmatpush1.bf16.xpose.msra.mxu0 0
        %1216 = vmatprep.subr.bf16.mxu0 0
        %1217 = vmatpush1.bf16.xpose.msra.mxu0 0
        %1218 = vmatprep.subr.bf16.mxu0 0
        %1219 = vmatpush1.bf16.xpose.msra.mxu0 0
        %1220 = vmatprep.subr.bf16.mxu0 0
        %1221 = vmatpush1.bf16.xpose.msra.mxu0 0
        %1222 = vmatprep.subr.bf16.mxu0 0
        %1223 = vmatpush1.bf16.xpose.msra.mxu0 0
        %1224 = vmatprep.mubr.bf16.mxu0 0
        %1225 = vmatmul.mubr.bf16.gmra.mrb[0].mxu0 %v1187
        %v1226 = vpop.f32.mrb[0].mxu0
        %v1227 = vadd.f32 0.0, %v1226
        %v1228 = vpop.f32.mrb[0].mxu0
        %v1229 = vpop.f32.mrb[0].mxu0
        %v1230 = vpop.f32.mrb[0].mxu0
        %1231 = vdwg.mxu0
        %v1232 = vld [vmem:[#allocation3] sm:$0xff]
        %v1233 = vsel %vm766, %v1227, -inf
        %1234 = vmax.xlane.f32.xlu0 %v1233
        %v1235 = vpop.xlane.xlu0 %1234
        %v1236 = vmax.f32 %v1232, %v1235
        %v1237 = vsub.f32 %v1232, %v1236
        %v1238 = vmul.f32 %v1237, 1.442695
        %v1239 = vpow.pop %v1238
        %1241 = vset.pattern.permute.xlu0 3
        %1242 = vperm.xlu0 %1241, %v1236
        %v1243 = vpop.permute.xlu0 %1242
        %v1245 = vsub.f32 %v1227, %v1243
        %v1246 = vmul.f32 %v1245, 1.442695
        %v1247 = vpow.pop %v1246
        %v1248 = vld [vmem:[#allocation4] sm:$0xff]
        %v1249 = vmul.f32 %v1239, %v1248
        %v1250 = vsel %vm766, %v1247, 0.0
        %1251 = vadd.xlane.f32.xlu0 %v1250
        %v1252 = vpop.xlane.xlu0 %1251
        %v1253 = vadd.f32 %v1249, %v1252
        %vm1254 = vcmask 31768
        %1255 = vst.msk [vmem:[#allocation4] sm:$0xff] %vm1254, %v1253
        %v1256 = vld [vmem:[#allocation5] sm:$0xff]
        %1258 = vset.pattern.permute.xlu0 3
        %1259 = vperm.xlu0 %1258, %v1239
        %v1260 = vpop.permute.xlu0 %1259
        %v1262 = vmul.f32 %v1260, %v1256
        %v1263 = vpack.c.bf16 %v1247, %v1247
        %1264 = vrot.lane.b32.xlu0 %v763, 104
        %v1265 = vpop.permute.xlu0 %1264
        %v1267 = vsel %vm766, %v1263, 0
        %v1270 = vsel %vm848, %v1265, 0
        %1272 = vmatprep.subr.bf16.mxu0 0
        %1273 = vmatpush1.bf16.msra.mxu0 %v1270
        %1274 = vmatprep.subr.bf16.mxu0 0
        %1275 = vmatpush1.bf16.msra.mxu0 0
        %1276 = vmatprep.subr.bf16.mxu0 0
        %1277 = vmatpush1.bf16.msra.mxu0 0
        %1278 = vmatprep.subr.bf16.mxu0 0
        %1279 = vmatpush1.bf16.msra.mxu0 0
        %1280 = vmatprep.subr.bf16.mxu0 0
        %1281 = vmatpush1.bf16.msra.mxu0 0
        %1282 = vmatprep.subr.bf16.mxu0 0
        %1283 = vmatpush1.bf16.msra.mxu0 0
        %1284 = vmatprep.subr.bf16.mxu0 0
        %1285 = vmatpush1.bf16.msra.mxu0 0
        %1286 = vmatprep.subr.bf16.mxu0 0
        %1287 = vmatpush1.bf16.msra.mxu0 0
        %1288 = vmatprep.subr.bf16.mxu0 0
        %1289 = vmatpush1.bf16.msra.mxu0 0
        %1290 = vmatprep.subr.bf16.mxu0 0
        %1291 = vmatpush1.bf16.msra.mxu0 0
        %1292 = vmatprep.subr.bf16.mxu0 0
        %1293 = vmatpush1.bf16.msra.mxu0 0
        %1294 = vmatprep.subr.bf16.mxu0 0
        %1295 = vmatpush1.bf16.msra.mxu0 0
        %1296 = vmatprep.subr.bf16.mxu0 0
        %1297 = vmatpush1.bf16.msra.mxu0 0
        %1298 = vmatprep.subr.bf16.mxu0 0
        %1299 = vmatpush1.bf16.msra.mxu0 0
        %1300 = vmatprep.subr.bf16.mxu0 0
        %1301 = vmatpush1.bf16.msra.mxu0 0
        %1302 = vmatprep.subr.bf16.mxu0 0
        %1303 = vmatpush1.bf16.msra.mxu0 0
        %1304 = vmatprep.mubr.bf16.mxu0 0
        %1305 = vmatmul.mubr.bf16.gmra.mrb[0].mxu0 %v1267
        %v1306 = vpop.f32.mrb[0].mxu0
        %v1307 = vadd.f32 0.0, %v1306
        %v1308 = vpop.f32.mrb[0].mxu0
        %v1309 = vpop.f32.mrb[0].mxu0
        %v1310 = vpop.f32.mrb[0].mxu0
        %1311 = vdwg.mxu0
        %1313 = vrot.lane.b32.xlu0 %v1307, 24
        %v1314 = vpop.permute.xlu0 %1313
        %v1316 = vadd.f32 %v1262, %v1314
        %vm1317 = vcmask 261312
        %1318 = vst.msk [vmem:[#allocation5] sm:$0xff] %vm1317, %v1316
        %1319 = vst.msk [vmem:[#allocation3] sm:$0xff] %vm1254, %v1236
        // Predicated region
        $region93: #{tpu_custom_call.1} parent=63 // pred_check
          %p1320 = pneg %p546
        $region94: #{tpu_custom_call.1} parent=63 // pred_check_branch
          %1322 = sbr.rel (%p1320) target = $region96
        $region95: #{tpu_custom_call.1} parent=63 // pred_region
          %v1323 = vld [vmem:[#allocation4] sm:$0xff]
          %v1324 = vrcp.pop %v1323
          %v1325 = vld [vmem:[#allocation5] sm:$0xff]
          %1327 = vset.pattern.permute.xlu0 0
          %1328 = vperm.xlu0 %1327, %v1324
          %v1329 = vpop.permute.xlu0 %1328
          %v1331 = vmul.f32 %v1325, %v1329
          %1332 = vst.msk [vmem:[#allocation5] sm:$0xff] %vm766, %v1331
          %v1333 = vld [vmem:[#allocation4] sm:$0xff]
          %v1334 = vrcp.pop %v1333
          %v1335 = vld [vmem:[#allocation5] sm:$0xff]
          %1337 = vset.pattern.permute.xlu0 1
          %1338 = vperm.xlu0 %1337, %v1334
          %v1339 = vpop.permute.xlu0 %1338
          %v1341 = vmul.f32 %v1335, %v1339
          %1342 = vst.msk [vmem:[#allocation5] sm:$0xff] %vm1035, %v1341
          %v1343 = vld [vmem:[#allocation4] sm:$0xff]
          %v1344 = vrcp.pop %v1343
          %v1345 = vld [vmem:[#allocation5] sm:$0xff]
          %1347 = vset.pattern.permute.xlu0 2
          %1348 = vperm.xlu0 %1347, %v1344
          %v1349 = vpop.permute.xlu0 %1348
          %v1351 = vmul.f32 %v1345, %v1349
          %1352 = vst.msk [vmem:[#allocation5] sm:$0xff] %vm1176, %v1351
          %v1353 = vld [vmem:[#allocation4] sm:$0xff]
          %v1354 = vrcp.pop %v1353
          %v1355 = vld [vmem:[#allocation5] sm:$0xff]
          %1357 = vset.pattern.permute.xlu0 3
          %1358 = vperm.xlu0 %1357, %v1354
          %v1359 = vpop.permute.xlu0 %1358
          %v1361 = vmul.f32 %v1355, %v1359
          %1362 = vst.msk [vmem:[#allocation5] sm:$0xff] %vm1317, %v1361
          %v1363 = vld [vmem:[#allocation5] sm:$0xff]
          %v1364 = vpack.c.bf16 %v1363, %v1363
          %v1365 = vld [vmem:[%s9] sm:$0xf]
          %v1366 = vld [vmem:[%s9 + $0x4] sm:$0xf]
          %v1367 = vld [vmem:[%s9 + $0x8] sm:$0xf]
          %v1368 = vld [vmem:[%s9 + $0xc] sm:$0xf]
          %v1369 = vld [vmem:[%s10] sm:$0x1]
          %v1371 = vlaneseq
          %v1372 = vshrl.u32 %v1371, 7
          %v1373 = vsub.s32 0, %v1372
          %v1374 = vrot.slane %v1369, %v1373
          %v1380 = vunpack.c.l.b16 %v1365
          %v1381 = vunpack.c.l.b16 %v1366
          %v1382 = vunpack.c.l.b16 %v1367
          %v1383 = vunpack.c.l.b16 %v1368
          %v1384 = vpack.c.b16 %v1381, %v1380
          %v1385 = vpack.c.b16 %v1383, %v1382
          %v1389 = vsel %vm652, %v1364, 0
          %1391 = vmatprep.subr.bf16.mxu0 0
          %1392 = vmatpush1.bf16.msra.mxu0 %v1384
          %1393 = vmatprep.subr.bf16.mxu0 0
          %1394 = vmatpush1.bf16.msra.mxu0 %v1385
          %1395 = vmatprep.subr.bf16.mxu0 0
          %1396 = vmatpush1.bf16.msra.mxu0 0
          %1397 = vmatprep.subr.bf16.mxu0 0
          %1398 = vmatpush1.bf16.msra.mxu0 0
          %1399 = vmatprep.subr.bf16.mxu0 0
          %1400 = vmatpush1.bf16.msra.mxu0 0
          %1401 = vmatprep.subr.bf16.mxu0 0
          %1402 = vmatpush1.bf16.msra.mxu0 0
          %1403 = vmatprep.subr.bf16.mxu0 0
          %1404 = vmatpush1.bf16.msra.mxu0 0
          %1405 = vmatprep.subr.bf16.mxu0 0
          %1406 = vmatpush1.bf16.msra.mxu0 0
          %1407 = vmatprep.subr.bf16.mxu0 0
          %1408 = vmatpush1.bf16.msra.mxu0 0
          %1409 = vmatprep.subr.bf16.mxu0 0
          %1410 = vmatpush1.bf16.msra.mxu0 0
          %1411 = vmatprep.subr.bf16.mxu0 0
          %1412 = vmatpush1.bf16.msra.mxu0 0
          %1413 = vmatprep.subr.bf16.mxu0 0
          %1414 = vmatpush1.bf16.msra.mxu0 0
          %1415 = vmatprep.subr.bf16.mxu0 0
          %1416 = vmatpush1.bf16.msra.mxu0 0
          %1417 = vmatprep.subr.bf16.mxu0 0
          %1418 = vmatpush1.bf16.msra.mxu0 0
          %1419 = vmatprep.subr.bf16.mxu0 0
          %1420 = vmatpush1.bf16.msra.mxu0 0
          %1421 = vmatprep.subr.bf16.mxu0 0
          %1422 = vmatpush1.bf16.msra.mxu0 0
          %1423 = vmatprep.mubr.bf16.mxu0 0
          %1424 = vmatmul.mubr.bf16.gmra.mrb[0].mxu0 %v1389
          %v1425 = vpop.f32.mrb[0].mxu0
          %v1426 = vadd.f32 %v1374, %v1425
          %v1427 = vpop.f32.mrb[0].mxu0
          %v1428 = vpop.f32.mrb[0].mxu0
          %v1429 = vpop.f32.mrb[0].mxu0
          %1430 = vdwg.mxu0
          %1431 = vst.msk [vmem:[%s544] sm:$0xff] %vm652, %v1426
        $region96: #{tpu_custom_call.1} parent=63 // pred_fallthru
          _
        %s1432 = sand.u32 %s314, 1
        %s1433 = scalar_lea.sflag [#allocation8], %s1432
        %s1434 = sand.u32 %s314, 1
        %s1435 = smul.addr %s1434, 8
        %s1436 = scalar_lea.vmem [#allocation17], %s1435
        // Predicated region
        $region97: #{tpu_custom_call.1} parent=63 // pred_check
          %p1437 = pneg %p324
        $region98: #{tpu_custom_call.1} parent=63 // pred_check_branch
          %1439 = sbr.rel (%p1437) target = $region100
        $region99: #{tpu_custom_call.1} parent=63 // pred_region
          %s1441 = ssub.s32 128, 128
          %1442 = vsyncadd %s1433, %s1441
          %s1443 = sadd.s32 %s39, %s38
          %s1444 = smul.addr %s1443, 128
          %s1445 = scalar_lea.hbm %s11, %s1444
          %s1447 = sshll.u32 %s1436, 4
          %s1448 = int_to_ptr.vmem [resolvable:$true] %s1447
          %1450 = dma.vmem_to_hbm [thread:$0]  %s1448, 128, %s1445, %s1433
        $region100: #{tpu_custom_call.1} parent=63 // pred_fallthru
          _
      $region64: #{tpu_custom_call.1} parent=5 // pred_fallthru
        _
      %p1451 = scmp.le.s32.totalorder 2, %s28
      // Predicated region
      $region101: #{tpu_custom_call.1} parent=5 // pred_check
        %p1452 = pneg %p1451
      $region102: #{tpu_custom_call.1} parent=5 // pred_check_branch
        %1454 = sbr.rel (%p1452) target = $region104
      $region103: #{tpu_custom_call.1} parent=5 // pred_region
        %s1455 = ssub.s32 %s28, 2
        // Predicated region
        $region105: #{tpu_custom_call.1} parent=103 // pred_check
          %p1456 = pneg %p330
        $region106: #{tpu_custom_call.1} parent=103 // pred_check_branch
          %1458 = sbr.rel (%p1456) target = $region108
        $region107: #{tpu_custom_call.1} parent=103 // pred_region
          %s1459 = sand.u32 %s315, 1
          %s1460 = scalar_lea.sflag [#allocation8], %s1459
          %s1461 = sand.u32 %s315, 1
          %s1462 = smul.addr %s1461, 8
          %s1463 = scalar_lea.vmem [#allocation17], %s1462
          %1464 = dma.done %s1460, 128
        $region108: #{tpu_custom_call.1} parent=103 // pred_fallthru
          _
      $region104: #{tpu_custom_call.1} parent=5 // pred_fallthru
        _
    $region6: #{tpu_custom_call.1} parent=1 // loop_footer
      %s32 = sadd.s32 1, %s28
    $region7: #{tpu_custom_call.1} parent=1 // loop_footer_branch
      %27 = sbr.rel target = $region3
    $region8: #{tpu_custom_call.1} parent=1 // loop_exit
      _
    %1465 = vsyncpa [#allocation7], 1
    %s1466 = scalar_lea.sflag [#allocation7], 1
    %1467 = vsyncpa %s1466, 1
    %1468 = vsyncpa [#allocation10], 1
    %s1469 = scalar_lea.sflag [#allocation10], 1
    %1470 = vsyncpa %s1469, 1
    %1471 = vsyncpa [#allocation13], 1
    %1472 = vsyncpa [#allocation16], 1
    %1473 = vsyncpa [#allocation8], 1
    %s1474 = scalar_lea.sflag [#allocation8], 1
    %1475 = vsyncpa %s1474, 1

</llo_original>
